<compile_context>
chip_gen: v7x
topology: tpu7x:2x2x1
jax: 0.10.0
libtpu: 0.0.40
codegen_flags: <defaults>
</compile_context>

<pallas_src>
import functools

import numpy as np
import jax
import jax.numpy as jnp
from jax import lax
from jax.experimental import pallas as pl
from jax.experimental.pallas import tpu as pltpu

# ------------------------- model hyper-parameters (small) -------------------
NR_TRACKS = 3
WINDOW = 16                 # -> filters3 = window
FILTERS_IN = 8
NR_RES_BLOCKS = 2
RATE_MULT = 1.5
BIN_SIZE = 8                # pool_size = bin_size // 2 = 4
FILTERS1 = 16
FILTERS3 = WINDOW
KERNEL1 = 3
KERNEL2 = 1
POOL = BIN_SIZE // 2

N_BATCH = 2
SEQ_LEN = 32                # divisible by POOL

PAD = 8                     # in-kernel zero-pad rows per side (>= max dilation,
                            # multiple of the 8-row sublane tile -> aligned concat)

INV_SQRT2 = 0.7071067811865476


# ------------------------------ in-kernel math -------------------------------
def _erf_poly(x):
    # Abramowitz & Stegun 7.1.26 polynomial erf (max abs err ~1.5e-7).  Mosaic
    # has no native erf lowering; this matches torch's exact GELU at f32.
    ax = jnp.abs(x)
    t = 1.0 / (1.0 + 0.3275911 * ax)
    poly = ((((1.061405429 * t - 1.453152027) * t + 1.421413741) * t
             - 0.284496736) * t + 0.254829592) * t
    e = 1.0 - poly * jnp.exp(-ax * ax)
    return jnp.where(x >= 0.0, e, -e)


def _gelu_exact(x):
    # torch.nn.GELU() default (approximate='none')
    return 0.5 * x * (1.0 + _erf_poly(x * INV_SQRT2))


def _softplus(x):
    # torch.nn.Softplus(beta=1, threshold=20)
    return jnp.where(x > 20.0, x, jnp.log(1.0 + jnp.exp(jnp.minimum(x, 20.0))))


# --------------------------------- fused kernel ------------------------------
def _fused_forward_kernel(x_ref, dw_ref, ds_ref, db_ref, pw_ref, ps_ref, pb_ref,
                          fw_ref, fs_ref, fb_ref, pool_ref, lw_ref, lb_ref,
                          o_ref, *, dilations, k):
    # x_ref   : (N, L, Cin)
    # dw_ref  : (B, k*Cin, F1)   im2col dilated-conv weights per res block
    # ds/db   : (B, 1, F1)       folded eval-mode BN affine of dconv block
    # pw_ref  : (B, F1, Cin)     1x1 conv weights per res block
    # ps/pb   : (B, 1, Cin)      folded BN affine of pwconv block
    # fw_ref  : (Cin, F3), fs/fb: (1, F3)        final 1x1 ConvBlock
    # pool_ref: (N*Lp, N*L)      block-diagonal AvgPool matrix
    # lw_ref  : (F3, T), lb_ref: (1, T)          linear head
    # o_ref   : (N, Lp, T)
    N, L, cin = x_ref.shape
    NL = N * L

    x2 = x_ref[...].reshape(NL, cin)                       # flat batch (N*L, Cin)

    for i, d in enumerate(dilations):                      # static 2-iter unroll
        res = x2
        # GELU only on real rows, then zero-pad along L in-kernel ('same' pad;
        # GELU(0)=0 so padding post-GELU is equivalent to padding the input).
        g = _gelu_exact(x2).reshape(N, L, cin)
        zpad = jnp.zeros((N, PAD, cin), jnp.float32)
        gp = jnp.concatenate([zpad, g, zpad], axis=1)      # (N, L+2*PAD, Cin)
        # im2col: stack the k dilated taps along lanes -> one MXU matmul with
        # contraction k*Cin instead of k small matmuls.
        cols = jnp.concatenate(
            [gp[:, PAD - d + t * d: PAD - d + t * d + L, :] for t in range(k)],
            axis=-1).reshape(NL, k * cin)                  # (N*L, k*Cin)
        h = jnp.dot(cols, dw_ref[i], preferred_element_type=jnp.float32)
        h = h * ds_ref[i] + db_ref[i]                      # folded BN (eval)

        gh = _gelu_exact(h)                                # pwconv ConvBlock
        y = jnp.dot(gh, pw_ref[i], preferred_element_type=jnp.float32)
        x2 = y * ps_ref[i] + pb_ref[i] + res               # +res (Dropout = id)

    # final 1x1 ConvBlock (final_dropout == identity in eval mode)
    gf = _gelu_exact(x2)
    f = jnp.dot(gf, fw_ref[...], preferred_element_type=jnp.float32)
    f = f * fs_ref[...] + fb_ref[...]                      # (N*L, F3)

    # AvgPool1d(p, p) as a block-diagonal (N*Lp, N*L) matmul, Linear, Softplus.
    pooled = jnp.dot(pool_ref[...], f, preferred_element_type=jnp.float32)
    yh = jnp.dot(pooled, lw_ref[...], preferred_element_type=jnp.float32)
    yh = yh + lb_ref[...]
    o_ref[...] = _softplus(yh).reshape(o_ref.shape)        # single tiny HBM store


# ------------------------------ pallas wrapper --------------------------------
def _cost_estimate(N, L, Lp):
    NL, NLp = N * L, N * Lp
    flops = (NR_RES_BLOCKS * 2 * NL * KERNEL1 * FILTERS_IN * FILTERS1
             + NR_RES_BLOCKS * 2 * NL * FILTERS1 * FILTERS_IN
             + 2 * NL * FILTERS_IN * FILTERS3
             + 2 * NLp * NL * FILTERS3
             + 2 * NLp * FILTERS3 * NR_TRACKS)
    transcendentals = (NR_RES_BLOCKS * NL * (FILTERS_IN + FILTERS1)
                       + NL * FILTERS_IN + NLp * NR_TRACKS)
    bytes_accessed = 4 * (NL * FILTERS_IN
                          + NR_RES_BLOCKS * (KERNEL1 * FILTERS_IN * FILTERS1
                                             + FILTERS1 * FILTERS_IN
                                             + 2 * FILTERS1 + 2 * FILTERS_IN)
                          + FILTERS_IN * FILTERS3 + 2 * FILTERS3
                          + NLp * NL + FILTERS3 * NR_TRACKS + NR_TRACKS
                          + NLp * NR_TRACKS)
    return pl.CostEstimate(flops=flops, transcendentals=transcendentals,
                           bytes_accessed=bytes_accessed)


def forward_pallas(x, params, dilations, pool_mat):
    # x: (N, L, filters_in) channels-last; pool_mat: (N*Lp, N*L) block-diag.
    N, L, _ = x.shape
    Lp = pool_mat.shape[0] // N

    # Host-side (glue) packing of weights into kernel-friendly layouts.
    dw = jnp.stack([w.reshape(KERNEL1 * FILTERS_IN, FILTERS1)
                    for w in params["dconv_w"]])           # (B, k*Cin, F1)
    ds = jnp.stack(params["dconv_s"])                      # (B, 1, F1)
    db = jnp.stack(params["dconv_b"])
    pw = jnp.stack([w[0] for w in params["pconv_w"]])      # (B, F1, Cin)
    ps = jnp.stack(params["pconv_s"])                      # (B, 1, Cin)
    pb = jnp.stack(params["pconv_b"])
    fw = params["final_w"][0]                              # (Cin, F3)
    fs, fb = params["final_s"], params["final_b"]
    lw, lb = params["lin_w"], params["lin_b"]

    kernel = functools.partial(_fused_forward_kernel,
                               dilations=tuple(dilations), k=KERNEL1)
    vmem = lambda: pl.BlockSpec(memory_space=pltpu.MemorySpace.VMEM)

    return pl.pallas_call(
        kernel,
        out_shape=jax.ShapeDtypeStruct((N, Lp, NR_TRACKS), jnp.float32),
        in_specs=[vmem() for _ in range(13)],
        out_specs=vmem(),
        cost_estimate=_cost_estimate(N, L, Lp),
    )(x, dw, ds, db, pw, ps, pb, fw, fs, fb, pool_mat, lw, lb)


# ------------------------------ parameter init --------------------------------
def init_params(key):
    keys = iter(jax.random.split(key, 8 * NR_RES_BLOCKS + 16))

    def conv_w(k, shape, fan_in):
        bound = 1.0 / np.sqrt(fan_in)
        return jax.random.uniform(k, shape, minval=-bound, maxval=bound,
                                  dtype=jnp.float32)

    def bn_affine(k, c):
        k1, k2, k3, k4 = jax.random.split(k, 4)
        gamma = jax.random.uniform(k1, (c,), minval=0.5, maxval=1.5,
                                   dtype=jnp.float32)
        beta = 0.1 * jax.random.normal(k2, (c,), dtype=jnp.float32)
        rmean = 0.1 * jax.random.normal(k3, (c,), dtype=jnp.float32)
        rvar = jax.random.uniform(k4, (c,), minval=0.5, maxval=1.5,
                                  dtype=jnp.float32)
        scale = gamma / jnp.sqrt(rvar + 1e-5)   # eval-mode BN folded to affine
        bias = beta - rmean * scale
        return scale.reshape(1, c), bias.reshape(1, c)

    params = {"dconv_w": [], "dconv_s": [], "dconv_b": [],
              "pconv_w": [], "pconv_s": [], "pconv_b": []}
    dilations = []
    dil = 1.0
    for _ in range(NR_RES_BLOCKS):
        d = int(np.round(dil))
        dilations.append(d)
        dil *= RATE_MULT
        params["dconv_w"].append(
            conv_w(next(keys), (KERNEL1, FILTERS_IN, FILTERS1),
                   FILTERS_IN * KERNEL1))
        s, b = bn_affine(next(keys), FILTERS1)
        params["dconv_s"].append(s); params["dconv_b"].append(b)
        # NOTE: torch init sets this BN gamma to zeros (bn_gamma='zeros'); we
        # use random values so the residual path is numerically exercised.
        params["pconv_w"].append(
            conv_w(next(keys), (KERNEL2, FILTERS1, FILTERS_IN),
                   FILTERS1 * KERNEL2))
        s, b = bn_affine(next(keys), FILTERS_IN)
        params["pconv_s"].append(s); params["pconv_b"].append(b)

    params["final_w"] = conv_w(next(keys), (1, FILTERS_IN, FILTERS3), FILTERS_IN)
    params["final_s"], params["final_b"] = bn_affine(next(keys), FILTERS3)
    params["lin_w"] = conv_w(next(keys), (FILTERS3, NR_TRACKS), FILTERS3)
    params["lin_b"] = conv_w(next(keys), (1, NR_TRACKS), FILTERS3)
    return params, dilations


# ------------------------------ pure-JAX reference ----------------------------
def _conv_block_ref(x, w, scale, bias, d):
    g = 0.5 * x * (1.0 + jax.scipy.special.erf(x * INV_SQRT2))
    k = w.shape[0]
    pad = d * (k - 1) // 2
    lhs = jnp.transpose(g, (0, 2, 1))        # (N, Cin, L)
    rhs = jnp.transpose(w, (2, 1, 0))        # (Cout, Cin, k)
    y = lax.conv_general_dilated(lhs, rhs, window_strides=(1,),
                                 padding=[(pad, pad)], rhs_dilation=(d,))
    y = jnp.transpose(y, (0, 2, 1))
    return y * scale + bias


def ref_forward(x, params, dilations):
    for i, d in enumerate(dilations):
        res = x
        x = _conv_block_ref(x, params["dconv_w"][i], params["dconv_s"][i],
                            params["dconv_b"][i], d)
        x = _conv_block_ref(x, params["pconv_w"][i], params["pconv_s"][i],
                            params["pconv_b"][i], 1)
        x = x + res
    x = _conv_block_ref(x, params["final_w"], params["final_s"],
                        params["final_b"], 1)
    n, l, c = x.shape
    x = jnp.mean(x.reshape(n, l // POOL, POOL, c), axis=2)
    y = x @ params["lin_w"] + params["lin_b"]
    return jax.nn.softplus(y)


# ------------------------------------ main ------------------------------------
if __name__ == "__main__":
    key = jax.random.PRNGKey(0)
    kx, kp = jax.random.split(key)

    # PyTorch-style input (N, C, L), then move to kernel layout (N, L, C).
    x_ncl = jax.random.normal(kx, (N_BATCH, FILTERS_IN, SEQ_LEN),
                              dtype=jnp.float32)
    x = jnp.transpose(x_ncl, (0, 2, 1))

    params, dilations = init_params(kp)

    lp = SEQ_LEN // POOL
    # Block-diagonal averaging matrix over the flattened (N*L) rows:
    # row r averages rows 4r..4r+3 (sample boundaries align with pool windows).
    pool_mat = jnp.asarray(
        np.kron(np.eye(N_BATCH * lp, dtype=np.float32),
                np.ones((1, POOL), dtype=np.float32)) / POOL)   # (N*Lp, N*L)

    out = forward_pallas(x, params, dilations, pool_mat)
    out = jax.block_until_ready(out)

    assert out.shape == (N_BATCH, lp, NR_TRACKS)
    ref = ref_forward(x, params, dilations)
    np.testing.assert_allclose(np.asarray(out), np.asarray(ref),
                               rtol=2e-3, atol=2e-3)
    print("KERNEL_OK")
</pallas_src>

<mosaic_0001>
module attributes {stable_mosaic.version = 11 : i64} {
  func.func @_fused_forward_kernel(%arg0: memref<2x32x8xf32, #tpu.memory_space<vmem>>, %arg1: memref<2x24x16xf32, #tpu.memory_space<vmem>>, %arg2: memref<2x1x16xf32, #tpu.memory_space<vmem>>, %arg3: memref<2x1x16xf32, #tpu.memory_space<vmem>>, %arg4: memref<2x16x8xf32, #tpu.memory_space<vmem>>, %arg5: memref<2x1x8xf32, #tpu.memory_space<vmem>>, %arg6: memref<2x1x8xf32, #tpu.memory_space<vmem>>, %arg7: memref<8x16xf32, #tpu.memory_space<vmem>>, %arg8: memref<1x16xf32, #tpu.memory_space<vmem>>, %arg9: memref<1x16xf32, #tpu.memory_space<vmem>>, %arg10: memref<16x64xf32, #tpu.memory_space<vmem>>, %arg11: memref<16x3xf32, #tpu.memory_space<vmem>>, %arg12: memref<1x3xf32, #tpu.memory_space<vmem>>, %arg13: memref<2x8x3xf32, #tpu.memory_space<vmem>>) attributes {dimension_semantics = [], scalar_prefetch = 0 : i64, scratch_operands = 0 : i64, tpu.core_type = #tpu.core_type<tc>} {
    %c0 = arith.constant 0 : index
    %c0_0 = arith.constant 0 : index
    %c0_1 = arith.constant 0 : index
    %0 = vector.load %arg0[%c0, %c0_0, %c0_1] : memref<2x32x8xf32, #tpu.memory_space<vmem>>, vector<2x32x8xf32>
    %1 = vector.shape_cast %0 : vector<2x32x8xf32> to vector<64x8xf32>
    %cst = arith.constant 5.000000e-01 : f32
    %2 = vector.broadcast %cst : f32 to vector<64x8xf32>
    %3 = arith.mulf %2, %1 : vector<64x8xf32>
    %cst_2 = arith.constant 0.707106769 : f32
    %4 = vector.broadcast %cst_2 : f32 to vector<64x8xf32>
    %5 = arith.mulf %1, %4 : vector<64x8xf32>
    %6 = math.absf %5 : vector<64x8xf32>
    %cst_3 = arith.constant 0.327591091 : f32
    %7 = vector.broadcast %cst_3 : f32 to vector<64x8xf32>
    %8 = arith.mulf %7, %6 : vector<64x8xf32>
    %cst_4 = arith.constant 1.000000e+00 : f32
    %9 = vector.broadcast %cst_4 : f32 to vector<64x8xf32>
    %10 = arith.addf %9, %8 : vector<64x8xf32>
    %cst_5 = arith.constant 1.000000e+00 : f32
    %11 = vector.broadcast %cst_5 : f32 to vector<64x8xf32>
    %12 = arith.divf %11, %10 : vector<64x8xf32>
    %cst_6 = arith.constant 1.06140542 : f32
    %13 = vector.broadcast %cst_6 : f32 to vector<64x8xf32>
    %14 = arith.mulf %13, %12 : vector<64x8xf32>
    %cst_7 = arith.constant 1.45315206 : f32
    %15 = vector.broadcast %cst_7 : f32 to vector<64x8xf32>
    %16 = arith.subf %14, %15 : vector<64x8xf32>
    %17 = arith.mulf %16, %12 : vector<64x8xf32>
    %cst_8 = arith.constant 1.42141378 : f32
    %18 = vector.broadcast %cst_8 : f32 to vector<64x8xf32>
    %19 = arith.addf %17, %18 : vector<64x8xf32>
    %20 = arith.mulf %19, %12 : vector<64x8xf32>
    %cst_9 = arith.constant 0.284496725 : f32
    %21 = vector.broadcast %cst_9 : f32 to vector<64x8xf32>
    %22 = arith.subf %20, %21 : vector<64x8xf32>
    %23 = arith.mulf %22, %12 : vector<64x8xf32>
    %cst_10 = arith.constant 0.254829586 : f32
    %24 = vector.broadcast %cst_10 : f32 to vector<64x8xf32>
    %25 = arith.addf %23, %24 : vector<64x8xf32>
    %26 = arith.mulf %25, %12 : vector<64x8xf32>
    %cst_11 = arith.constant 0.000000e+00 : f32
    %27 = vector.broadcast %cst_11 : f32 to vector<64x8xf32>
    %28 = arith.subf %27, %6 : vector<64x8xf32>
    %29 = arith.mulf %28, %6 : vector<64x8xf32>
    %30 = math.exp %29 : vector<64x8xf32>
    %31 = arith.mulf %26, %30 : vector<64x8xf32>
    %cst_12 = arith.constant 1.000000e+00 : f32
    %32 = vector.broadcast %cst_12 : f32 to vector<64x8xf32>
    %33 = arith.subf %32, %31 : vector<64x8xf32>
    %cst_13 = arith.constant 0.000000e+00 : f32
    %34 = vector.broadcast %cst_13 : f32 to vector<64x8xf32>
    %35 = arith.cmpf oge, %5, %34 : vector<64x8xf32>
    %cst_14 = arith.constant 0.000000e+00 : f32
    %36 = vector.broadcast %cst_14 : f32 to vector<64x8xf32>
    %37 = arith.subf %36, %33 : vector<64x8xf32>
    %38 = arith.select %35, %33, %37 : vector<64x8xi1>, vector<64x8xf32>
    %cst_15 = arith.constant 1.000000e+00 : f32
    %39 = vector.broadcast %cst_15 : f32 to vector<64x8xf32>
    %40 = arith.addf %39, %38 : vector<64x8xf32>
    %41 = arith.mulf %3, %40 : vector<64x8xf32>
    %42 = vector.shape_cast %41 : vector<64x8xf32> to vector<2x32x8xf32>
    %cst_16 = arith.constant 0.000000e+00 : f32
    %43 = vector.broadcast %cst_16 : f32 to vector<2x8x8xf32>
    %44 = tpu.concatenate %43, %42, %43 in 1 : vector<2x8x8xf32>, vector<2x32x8xf32>, vector<2x8x8xf32> -> vector<2x48x8xf32>
    %45 = vector.extract_strided_slice %44 {offsets = [0, 7, 0], sizes = [2, 32, 8], strides = [1, 1, 1]} : vector<2x48x8xf32> to vector<2x32x8xf32>
    %46 = vector.extract_strided_slice %44 {offsets = [0, 8, 0], sizes = [2, 32, 8], strides = [1, 1, 1]} : vector<2x48x8xf32> to vector<2x32x8xf32>
    %47 = vector.extract_strided_slice %44 {offsets = [0, 9, 0], sizes = [2, 32, 8], strides = [1, 1, 1]} : vector<2x48x8xf32> to vector<2x32x8xf32>
    %48 = tpu.concatenate %45, %46, %47 in 2 : vector<2x32x8xf32>, vector<2x32x8xf32>, vector<2x32x8xf32> -> vector<2x32x24xf32>
    %49 = vector.shape_cast %48 : vector<2x32x24xf32> to vector<64x24xf32>
    %c0_17 = arith.constant 0 : index
    %c0_18 = arith.constant 0 : index
    %c0_19 = arith.constant 0 : index
    %50 = vector.load %arg1[%c0_17, %c0_18, %c0_19] : memref<2x24x16xf32, #tpu.memory_space<vmem>>, vector<1x24x16xf32>
    %51 = vector.shape_cast %50 : vector<1x24x16xf32> to vector<24x16xf32>
    %cst_20 = arith.constant dense<0.000000e+00> : vector<64x16xf32>
    %52 = tpu.matmul %49, %51, %cst_20 {dimension_numbers = #tpu.dot_dimension_numbers<[1], [0], [0], [1], [0, 0, 1, 1], [], []>} : vector<64x24xf32>, vector<24x16xf32>, vector<64x16xf32> -> vector<64x16xf32>
    %c0_21 = arith.constant 0 : index
    %c0_22 = arith.constant 0 : index
    %c0_23 = arith.constant 0 : index
    %53 = vector.load %arg2[%c0_21, %c0_22, %c0_23] : memref<2x1x16xf32, #tpu.memory_space<vmem>>, vector<1x1x16xf32>
    %54 = vector.shape_cast %53 : vector<1x1x16xf32> to vector<1x16xf32>
    %55 = vector.broadcast %54 : vector<1x16xf32> to vector<64x16xf32>
    %56 = arith.mulf %52, %55 : vector<64x16xf32>
    %c0_24 = arith.constant 0 : index
    %c0_25 = arith.constant 0 : index
    %c0_26 = arith.constant 0 : index
    %57 = vector.load %arg3[%c0_24, %c0_25, %c0_26] : memref<2x1x16xf32, #tpu.memory_space<vmem>>, vector<1x1x16xf32>
    %58 = vector.shape_cast %57 : vector<1x1x16xf32> to vector<1x16xf32>
    %59 = vector.broadcast %58 : vector<1x16xf32> to vector<64x16xf32>
    %60 = arith.addf %56, %59 : vector<64x16xf32>
    %cst_27 = arith.constant 5.000000e-01 : f32
    %61 = vector.broadcast %cst_27 : f32 to vector<64x16xf32>
    %62 = arith.mulf %61, %60 : vector<64x16xf32>
    %cst_28 = arith.constant 0.707106769 : f32
    %63 = vector.broadcast %cst_28 : f32 to vector<64x16xf32>
    %64 = arith.mulf %60, %63 : vector<64x16xf32>
    %65 = math.absf %64 : vector<64x16xf32>
    %cst_29 = arith.constant 0.327591091 : f32
    %66 = vector.broadcast %cst_29 : f32 to vector<64x16xf32>
    %67 = arith.mulf %66, %65 : vector<64x16xf32>
    %cst_30 = arith.constant 1.000000e+00 : f32
    %68 = vector.broadcast %cst_30 : f32 to vector<64x16xf32>
    %69 = arith.addf %68, %67 : vector<64x16xf32>
    %cst_31 = arith.constant 1.000000e+00 : f32
    %70 = vector.broadcast %cst_31 : f32 to vector<64x16xf32>
    %71 = arith.divf %70, %69 : vector<64x16xf32>
    %cst_32 = arith.constant 1.06140542 : f32
    %72 = vector.broadcast %cst_32 : f32 to vector<64x16xf32>
    %73 = arith.mulf %72, %71 : vector<64x16xf32>
    %cst_33 = arith.constant 1.45315206 : f32
    %74 = vector.broadcast %cst_33 : f32 to vector<64x16xf32>
    %75 = arith.subf %73, %74 : vector<64x16xf32>
    %76 = arith.mulf %75, %71 : vector<64x16xf32>
    %cst_34 = arith.constant 1.42141378 : f32
    %77 = vector.broadcast %cst_34 : f32 to vector<64x16xf32>
    %78 = arith.addf %76, %77 : vector<64x16xf32>
    %79 = arith.mulf %78, %71 : vector<64x16xf32>
    %cst_35 = arith.constant 0.284496725 : f32
    %80 = vector.broadcast %cst_35 : f32 to vector<64x16xf32>
    %81 = arith.subf %79, %80 : vector<64x16xf32>
    %82 = arith.mulf %81, %71 : vector<64x16xf32>
    %cst_36 = arith.constant 0.254829586 : f32
    %83 = vector.broadcast %cst_36 : f32 to vector<64x16xf32>
    %84 = arith.addf %82, %83 : vector<64x16xf32>
    %85 = arith.mulf %84, %71 : vector<64x16xf32>
    %cst_37 = arith.constant 0.000000e+00 : f32
    %86 = vector.broadcast %cst_37 : f32 to vector<64x16xf32>
    %87 = arith.subf %86, %65 : vector<64x16xf32>
    %88 = arith.mulf %87, %65 : vector<64x16xf32>
    %89 = math.exp %88 : vector<64x16xf32>
    %90 = arith.mulf %85, %89 : vector<64x16xf32>
    %cst_38 = arith.constant 1.000000e+00 : f32
    %91 = vector.broadcast %cst_38 : f32 to vector<64x16xf32>
    %92 = arith.subf %91, %90 : vector<64x16xf32>
    %cst_39 = arith.constant 0.000000e+00 : f32
    %93 = vector.broadcast %cst_39 : f32 to vector<64x16xf32>
    %94 = arith.cmpf oge, %64, %93 : vector<64x16xf32>
    %cst_40 = arith.constant 0.000000e+00 : f32
    %95 = vector.broadcast %cst_40 : f32 to vector<64x16xf32>
    %96 = arith.subf %95, %92 : vector<64x16xf32>
    %97 = arith.select %94, %92, %96 : vector<64x16xi1>, vector<64x16xf32>
    %cst_41 = arith.constant 1.000000e+00 : f32
    %98 = vector.broadcast %cst_41 : f32 to vector<64x16xf32>
    %99 = arith.addf %98, %97 : vector<64x16xf32>
    %100 = arith.mulf %62, %99 : vector<64x16xf32>
    %c0_42 = arith.constant 0 : index
    %c0_43 = arith.constant 0 : index
    %c0_44 = arith.constant 0 : index
    %101 = vector.load %arg4[%c0_42, %c0_43, %c0_44] : memref<2x16x8xf32, #tpu.memory_space<vmem>>, vector<1x16x8xf32>
    %102 = vector.shape_cast %101 : vector<1x16x8xf32> to vector<16x8xf32>
    %cst_45 = arith.constant dense<0.000000e+00> : vector<64x8xf32>
    %103 = tpu.matmul %100, %102, %cst_45 {dimension_numbers = #tpu.dot_dimension_numbers<[1], [0], [0], [1], [0, 0, 1, 1], [], []>} : vector<64x16xf32>, vector<16x8xf32>, vector<64x8xf32> -> vector<64x8xf32>
    %c0_46 = arith.constant 0 : index
    %c0_47 = arith.constant 0 : index
    %c0_48 = arith.constant 0 : index
    %104 = vector.load %arg5[%c0_46, %c0_47, %c0_48] : memref<2x1x8xf32, #tpu.memory_space<vmem>>, vector<1x1x8xf32>
    %105 = vector.shape_cast %104 : vector<1x1x8xf32> to vector<1x8xf32>
    %106 = vector.broadcast %105 : vector<1x8xf32> to vector<64x8xf32>
    %107 = arith.mulf %103, %106 : vector<64x8xf32>
    %c0_49 = arith.constant 0 : index
    %c0_50 = arith.constant 0 : index
    %c0_51 = arith.constant 0 : index
    %108 = vector.load %arg6[%c0_49, %c0_50, %c0_51] : memref<2x1x8xf32, #tpu.memory_space<vmem>>, vector<1x1x8xf32>
    %109 = vector.shape_cast %108 : vector<1x1x8xf32> to vector<1x8xf32>
    %110 = vector.broadcast %109 : vector<1x8xf32> to vector<64x8xf32>
    %111 = arith.addf %107, %110 : vector<64x8xf32>
    %112 = arith.addf %111, %1 : vector<64x8xf32>
    %cst_52 = arith.constant 5.000000e-01 : f32
    %113 = vector.broadcast %cst_52 : f32 to vector<64x8xf32>
    %114 = arith.mulf %113, %112 : vector<64x8xf32>
    %cst_53 = arith.constant 0.707106769 : f32
    %115 = vector.broadcast %cst_53 : f32 to vector<64x8xf32>
    %116 = arith.mulf %112, %115 : vector<64x8xf32>
    %117 = math.absf %116 : vector<64x8xf32>
    %cst_54 = arith.constant 0.327591091 : f32
    %118 = vector.broadcast %cst_54 : f32 to vector<64x8xf32>
    %119 = arith.mulf %118, %117 : vector<64x8xf32>
    %cst_55 = arith.constant 1.000000e+00 : f32
    %120 = vector.broadcast %cst_55 : f32 to vector<64x8xf32>
    %121 = arith.addf %120, %119 : vector<64x8xf32>
    %cst_56 = arith.constant 1.000000e+00 : f32
    %122 = vector.broadcast %cst_56 : f32 to vector<64x8xf32>
    %123 = arith.divf %122, %121 : vector<64x8xf32>
    %cst_57 = arith.constant 1.06140542 : f32
    %124 = vector.broadcast %cst_57 : f32 to vector<64x8xf32>
    %125 = arith.mulf %124, %123 : vector<64x8xf32>
    %cst_58 = arith.constant 1.45315206 : f32
    %126 = vector.broadcast %cst_58 : f32 to vector<64x8xf32>
    %127 = arith.subf %125, %126 : vector<64x8xf32>
    %128 = arith.mulf %127, %123 : vector<64x8xf32>
    %cst_59 = arith.constant 1.42141378 : f32
    %129 = vector.broadcast %cst_59 : f32 to vector<64x8xf32>
    %130 = arith.addf %128, %129 : vector<64x8xf32>
    %131 = arith.mulf %130, %123 : vector<64x8xf32>
    %cst_60 = arith.constant 0.284496725 : f32
    %132 = vector.broadcast %cst_60 : f32 to vector<64x8xf32>
    %133 = arith.subf %131, %132 : vector<64x8xf32>
    %134 = arith.mulf %133, %123 : vector<64x8xf32>
    %cst_61 = arith.constant 0.254829586 : f32
    %135 = vector.broadcast %cst_61 : f32 to vector<64x8xf32>
    %136 = arith.addf %134, %135 : vector<64x8xf32>
    %137 = arith.mulf %136, %123 : vector<64x8xf32>
    %cst_62 = arith.constant 0.000000e+00 : f32
    %138 = vector.broadcast %cst_62 : f32 to vector<64x8xf32>
    %139 = arith.subf %138, %117 : vector<64x8xf32>
    %140 = arith.mulf %139, %117 : vector<64x8xf32>
    %141 = math.exp %140 : vector<64x8xf32>
    %142 = arith.mulf %137, %141 : vector<64x8xf32>
    %cst_63 = arith.constant 1.000000e+00 : f32
    %143 = vector.broadcast %cst_63 : f32 to vector<64x8xf32>
    %144 = arith.subf %143, %142 : vector<64x8xf32>
    %cst_64 = arith.constant 0.000000e+00 : f32
    %145 = vector.broadcast %cst_64 : f32 to vector<64x8xf32>
    %146 = arith.cmpf oge, %116, %145 : vector<64x8xf32>
    %cst_65 = arith.constant 0.000000e+00 : f32
    %147 = vector.broadcast %cst_65 : f32 to vector<64x8xf32>
    %148 = arith.subf %147, %144 : vector<64x8xf32>
    %149 = arith.select %146, %144, %148 : vector<64x8xi1>, vector<64x8xf32>
    %cst_66 = arith.constant 1.000000e+00 : f32
    %150 = vector.broadcast %cst_66 : f32 to vector<64x8xf32>
    %151 = arith.addf %150, %149 : vector<64x8xf32>
    %152 = arith.mulf %114, %151 : vector<64x8xf32>
    %153 = vector.shape_cast %152 : vector<64x8xf32> to vector<2x32x8xf32>
    %cst_67 = arith.constant 0.000000e+00 : f32
    %154 = vector.broadcast %cst_67 : f32 to vector<2x8x8xf32>
    %155 = tpu.concatenate %154, %153, %154 in 1 : vector<2x8x8xf32>, vector<2x32x8xf32>, vector<2x8x8xf32> -> vector<2x48x8xf32>
    %156 = vector.extract_strided_slice %155 {offsets = [0, 6, 0], sizes = [2, 32, 8], strides = [1, 1, 1]} : vector<2x48x8xf32> to vector<2x32x8xf32>
    %157 = vector.extract_strided_slice %155 {offsets = [0, 8, 0], sizes = [2, 32, 8], strides = [1, 1, 1]} : vector<2x48x8xf32> to vector<2x32x8xf32>
    %158 = vector.extract_strided_slice %155 {offsets = [0, 10, 0], sizes = [2, 32, 8], strides = [1, 1, 1]} : vector<2x48x8xf32> to vector<2x32x8xf32>
    %159 = tpu.concatenate %156, %157, %158 in 2 : vector<2x32x8xf32>, vector<2x32x8xf32>, vector<2x32x8xf32> -> vector<2x32x24xf32>
    %160 = vector.shape_cast %159 : vector<2x32x24xf32> to vector<64x24xf32>
    %c1 = arith.constant 1 : index
    %c0_68 = arith.constant 0 : index
    %c0_69 = arith.constant 0 : index
    %161 = vector.load %arg1[%c1, %c0_68, %c0_69] : memref<2x24x16xf32, #tpu.memory_space<vmem>>, vector<1x24x16xf32>
    %162 = vector.shape_cast %161 : vector<1x24x16xf32> to vector<24x16xf32>
    %cst_70 = arith.constant dense<0.000000e+00> : vector<64x16xf32>
    %163 = tpu.matmul %160, %162, %cst_70 {dimension_numbers = #tpu.dot_dimension_numbers<[1], [0], [0], [1], [0, 0, 1, 1], [], []>} : vector<64x24xf32>, vector<24x16xf32>, vector<64x16xf32> -> vector<64x16xf32>
    %c1_71 = arith.constant 1 : index
    %c0_72 = arith.constant 0 : index
    %c0_73 = arith.constant 0 : index
    %164 = vector.load %arg2[%c1_71, %c0_72, %c0_73] : memref<2x1x16xf32, #tpu.memory_space<vmem>>, vector<1x1x16xf32>
    %165 = vector.shape_cast %164 : vector<1x1x16xf32> to vector<1x16xf32>
    %166 = vector.broadcast %165 : vector<1x16xf32> to vector<64x16xf32>
    %167 = arith.mulf %163, %166 : vector<64x16xf32>
    %c1_74 = arith.constant 1 : index
    %c0_75 = arith.constant 0 : index
    %c0_76 = arith.constant 0 : index
    %168 = vector.load %arg3[%c1_74, %c0_75, %c0_76] : memref<2x1x16xf32, #tpu.memory_space<vmem>>, vector<1x1x16xf32>
    %169 = vector.shape_cast %168 : vector<1x1x16xf32> to vector<1x16xf32>
    %170 = vector.broadcast %169 : vector<1x16xf32> to vector<64x16xf32>
    %171 = arith.addf %167, %170 : vector<64x16xf32>
    %cst_77 = arith.constant 5.000000e-01 : f32
    %172 = vector.broadcast %cst_77 : f32 to vector<64x16xf32>
    %173 = arith.mulf %172, %171 : vector<64x16xf32>
    %cst_78 = arith.constant 0.707106769 : f32
    %174 = vector.broadcast %cst_78 : f32 to vector<64x16xf32>
    %175 = arith.mulf %171, %174 : vector<64x16xf32>
    %176 = math.absf %175 : vector<64x16xf32>
    %cst_79 = arith.constant 0.327591091 : f32
    %177 = vector.broadcast %cst_79 : f32 to vector<64x16xf32>
    %178 = arith.mulf %177, %176 : vector<64x16xf32>
    %cst_80 = arith.constant 1.000000e+00 : f32
    %179 = vector.broadcast %cst_80 : f32 to vector<64x16xf32>
    %180 = arith.addf %179, %178 : vector<64x16xf32>
    %cst_81 = arith.constant 1.000000e+00 : f32
    %181 = vector.broadcast %cst_81 : f32 to vector<64x16xf32>
    %182 = arith.divf %181, %180 : vector<64x16xf32>
    %cst_82 = arith.constant 1.06140542 : f32
    %183 = vector.broadcast %cst_82 : f32 to vector<64x16xf32>
    %184 = arith.mulf %183, %182 : vector<64x16xf32>
    %cst_83 = arith.constant 1.45315206 : f32
    %185 = vector.broadcast %cst_83 : f32 to vector<64x16xf32>
    %186 = arith.subf %184, %185 : vector<64x16xf32>
    %187 = arith.mulf %186, %182 : vector<64x16xf32>
    %cst_84 = arith.constant 1.42141378 : f32
    %188 = vector.broadcast %cst_84 : f32 to vector<64x16xf32>
    %189 = arith.addf %187, %188 : vector<64x16xf32>
    %190 = arith.mulf %189, %182 : vector<64x16xf32>
    %cst_85 = arith.constant 0.284496725 : f32
    %191 = vector.broadcast %cst_85 : f32 to vector<64x16xf32>
    %192 = arith.subf %190, %191 : vector<64x16xf32>
    %193 = arith.mulf %192, %182 : vector<64x16xf32>
    %cst_86 = arith.constant 0.254829586 : f32
    %194 = vector.broadcast %cst_86 : f32 to vector<64x16xf32>
    %195 = arith.addf %193, %194 : vector<64x16xf32>
    %196 = arith.mulf %195, %182 : vector<64x16xf32>
    %cst_87 = arith.constant 0.000000e+00 : f32
    %197 = vector.broadcast %cst_87 : f32 to vector<64x16xf32>
    %198 = arith.subf %197, %176 : vector<64x16xf32>
    %199 = arith.mulf %198, %176 : vector<64x16xf32>
    %200 = math.exp %199 : vector<64x16xf32>
    %201 = arith.mulf %196, %200 : vector<64x16xf32>
    %cst_88 = arith.constant 1.000000e+00 : f32
    %202 = vector.broadcast %cst_88 : f32 to vector<64x16xf32>
    %203 = arith.subf %202, %201 : vector<64x16xf32>
    %cst_89 = arith.constant 0.000000e+00 : f32
    %204 = vector.broadcast %cst_89 : f32 to vector<64x16xf32>
    %205 = arith.cmpf oge, %175, %204 : vector<64x16xf32>
    %cst_90 = arith.constant 0.000000e+00 : f32
    %206 = vector.broadcast %cst_90 : f32 to vector<64x16xf32>
    %207 = arith.subf %206, %203 : vector<64x16xf32>
    %208 = arith.select %205, %203, %207 : vector<64x16xi1>, vector<64x16xf32>
    %cst_91 = arith.constant 1.000000e+00 : f32
    %209 = vector.broadcast %cst_91 : f32 to vector<64x16xf32>
    %210 = arith.addf %209, %208 : vector<64x16xf32>
    %211 = arith.mulf %173, %210 : vector<64x16xf32>
    %c1_92 = arith.constant 1 : index
    %c0_93 = arith.constant 0 : index
    %c0_94 = arith.constant 0 : index
    %212 = vector.load %arg4[%c1_92, %c0_93, %c0_94] : memref<2x16x8xf32, #tpu.memory_space<vmem>>, vector<1x16x8xf32>
    %213 = vector.shape_cast %212 : vector<1x16x8xf32> to vector<16x8xf32>
    %cst_95 = arith.constant dense<0.000000e+00> : vector<64x8xf32>
    %214 = tpu.matmul %211, %213, %cst_95 {dimension_numbers = #tpu.dot_dimension_numbers<[1], [0], [0], [1], [0, 0, 1, 1], [], []>} : vector<64x16xf32>, vector<16x8xf32>, vector<64x8xf32> -> vector<64x8xf32>
    %c1_96 = arith.constant 1 : index
    %c0_97 = arith.constant 0 : index
    %c0_98 = arith.constant 0 : index
    %215 = vector.load %arg5[%c1_96, %c0_97, %c0_98] : memref<2x1x8xf32, #tpu.memory_space<vmem>>, vector<1x1x8xf32>
    %216 = vector.shape_cast %215 : vector<1x1x8xf32> to vector<1x8xf32>
    %217 = vector.broadcast %216 : vector<1x8xf32> to vector<64x8xf32>
    %218 = arith.mulf %214, %217 : vector<64x8xf32>
    %c1_99 = arith.constant 1 : index
    %c0_100 = arith.constant 0 : index
    %c0_101 = arith.constant 0 : index
    %219 = vector.load %arg6[%c1_99, %c0_100, %c0_101] : memref<2x1x8xf32, #tpu.memory_space<vmem>>, vector<1x1x8xf32>
    %220 = vector.shape_cast %219 : vector<1x1x8xf32> to vector<1x8xf32>
    %221 = vector.broadcast %220 : vector<1x8xf32> to vector<64x8xf32>
    %222 = arith.addf %218, %221 : vector<64x8xf32>
    %223 = arith.addf %222, %112 : vector<64x8xf32>
    %cst_102 = arith.constant 5.000000e-01 : f32
    %224 = vector.broadcast %cst_102 : f32 to vector<64x8xf32>
    %225 = arith.mulf %224, %223 : vector<64x8xf32>
    %cst_103 = arith.constant 0.707106769 : f32
    %226 = vector.broadcast %cst_103 : f32 to vector<64x8xf32>
    %227 = arith.mulf %223, %226 : vector<64x8xf32>
    %228 = math.absf %227 : vector<64x8xf32>
    %cst_104 = arith.constant 0.327591091 : f32
    %229 = vector.broadcast %cst_104 : f32 to vector<64x8xf32>
    %230 = arith.mulf %229, %228 : vector<64x8xf32>
    %cst_105 = arith.constant 1.000000e+00 : f32
    %231 = vector.broadcast %cst_105 : f32 to vector<64x8xf32>
    %232 = arith.addf %231, %230 : vector<64x8xf32>
    %cst_106 = arith.constant 1.000000e+00 : f32
    %233 = vector.broadcast %cst_106 : f32 to vector<64x8xf32>
    %234 = arith.divf %233, %232 : vector<64x8xf32>
    %cst_107 = arith.constant 1.06140542 : f32
    %235 = vector.broadcast %cst_107 : f32 to vector<64x8xf32>
    %236 = arith.mulf %235, %234 : vector<64x8xf32>
    %cst_108 = arith.constant 1.45315206 : f32
    %237 = vector.broadcast %cst_108 : f32 to vector<64x8xf32>
    %238 = arith.subf %236, %237 : vector<64x8xf32>
    %239 = arith.mulf %238, %234 : vector<64x8xf32>
    %cst_109 = arith.constant 1.42141378 : f32
    %240 = vector.broadcast %cst_109 : f32 to vector<64x8xf32>
    %241 = arith.addf %239, %240 : vector<64x8xf32>
    %242 = arith.mulf %241, %234 : vector<64x8xf32>
    %cst_110 = arith.constant 0.284496725 : f32
    %243 = vector.broadcast %cst_110 : f32 to vector<64x8xf32>
    %244 = arith.subf %242, %243 : vector<64x8xf32>
    %245 = arith.mulf %244, %234 : vector<64x8xf32>
    %cst_111 = arith.constant 0.254829586 : f32
    %246 = vector.broadcast %cst_111 : f32 to vector<64x8xf32>
    %247 = arith.addf %245, %246 : vector<64x8xf32>
    %248 = arith.mulf %247, %234 : vector<64x8xf32>
    %cst_112 = arith.constant 0.000000e+00 : f32
    %249 = vector.broadcast %cst_112 : f32 to vector<64x8xf32>
    %250 = arith.subf %249, %228 : vector<64x8xf32>
    %251 = arith.mulf %250, %228 : vector<64x8xf32>
    %252 = math.exp %251 : vector<64x8xf32>
    %253 = arith.mulf %248, %252 : vector<64x8xf32>
    %cst_113 = arith.constant 1.000000e+00 : f32
    %254 = vector.broadcast %cst_113 : f32 to vector<64x8xf32>
    %255 = arith.subf %254, %253 : vector<64x8xf32>
    %cst_114 = arith.constant 0.000000e+00 : f32
    %256 = vector.broadcast %cst_114 : f32 to vector<64x8xf32>
    %257 = arith.cmpf oge, %227, %256 : vector<64x8xf32>
    %cst_115 = arith.constant 0.000000e+00 : f32
    %258 = vector.broadcast %cst_115 : f32 to vector<64x8xf32>
    %259 = arith.subf %258, %255 : vector<64x8xf32>
    %260 = arith.select %257, %255, %259 : vector<64x8xi1>, vector<64x8xf32>
    %cst_116 = arith.constant 1.000000e+00 : f32
    %261 = vector.broadcast %cst_116 : f32 to vector<64x8xf32>
    %262 = arith.addf %261, %260 : vector<64x8xf32>
    %263 = arith.mulf %225, %262 : vector<64x8xf32>
    %c0_117 = arith.constant 0 : index
    %c0_118 = arith.constant 0 : index
    %264 = vector.load %arg7[%c0_117, %c0_118] : memref<8x16xf32, #tpu.memory_space<vmem>>, vector<8x16xf32>
    %cst_119 = arith.constant dense<0.000000e+00> : vector<64x16xf32>
    %265 = tpu.matmul %263, %264, %cst_119 {dimension_numbers = #tpu.dot_dimension_numbers<[1], [0], [0], [1], [0, 0, 1, 1], [], []>} : vector<64x8xf32>, vector<8x16xf32>, vector<64x16xf32> -> vector<64x16xf32>
    %c0_120 = arith.constant 0 : index
    %c0_121 = arith.constant 0 : index
    %266 = vector.load %arg8[%c0_120, %c0_121] : memref<1x16xf32, #tpu.memory_space<vmem>>, vector<1x16xf32>
    %267 = vector.broadcast %266 : vector<1x16xf32> to vector<64x16xf32>
    %268 = arith.mulf %265, %267 : vector<64x16xf32>
    %c0_122 = arith.constant 0 : index
    %c0_123 = arith.constant 0 : index
    %269 = vector.load %arg9[%c0_122, %c0_123] : memref<1x16xf32, #tpu.memory_space<vmem>>, vector<1x16xf32>
    %270 = vector.broadcast %269 : vector<1x16xf32> to vector<64x16xf32>
    %271 = arith.addf %268, %270 : vector<64x16xf32>
    %c0_124 = arith.constant 0 : index
    %c0_125 = arith.constant 0 : index
    %272 = vector.load %arg10[%c0_124, %c0_125] : memref<16x64xf32, #tpu.memory_space<vmem>>, vector<16x64xf32>
    %cst_126 = arith.constant dense<0.000000e+00> : vector<16x16xf32>
    %273 = tpu.matmul %272, %271, %cst_126 {dimension_numbers = #tpu.dot_dimension_numbers<[1], [0], [0], [1], [0, 0, 1, 1], [], []>} : vector<16x64xf32>, vector<64x16xf32>, vector<16x16xf32> -> vector<16x16xf32>
    %c0_127 = arith.constant 0 : index
    %c0_128 = arith.constant 0 : index
    %274 = vector.load %arg11[%c0_127, %c0_128] : memref<16x3xf32, #tpu.memory_space<vmem>>, vector<16x3xf32>
    %cst_129 = arith.constant dense<0.000000e+00> : vector<16x3xf32>
    %275 = tpu.matmul %273, %274, %cst_129 {dimension_numbers = #tpu.dot_dimension_numbers<[1], [0], [0], [1], [0, 0, 1, 1], [], []>} : vector<16x16xf32>, vector<16x3xf32>, vector<16x3xf32> -> vector<16x3xf32>
    %c0_130 = arith.constant 0 : index
    %c0_131 = arith.constant 0 : index
    %276 = vector.load %arg12[%c0_130, %c0_131] : memref<1x3xf32, #tpu.memory_space<vmem>>, vector<1x3xf32>
    %277 = vector.broadcast %276 : vector<1x3xf32> to vector<16x3xf32>
    %278 = arith.addf %275, %277 : vector<16x3xf32>
    %cst_132 = arith.constant 2.000000e+01 : f32
    %279 = vector.broadcast %cst_132 : f32 to vector<16x3xf32>
    %280 = arith.cmpf ogt, %278, %279 : vector<16x3xf32>
    %cst_133 = arith.constant 2.000000e+01 : f32
    %281 = vector.broadcast %cst_133 : f32 to vector<16x3xf32>
    %282 = arith.minimumf %278, %281 : vector<16x3xf32>
    %283 = math.exp %282 : vector<16x3xf32>
    %cst_134 = arith.constant 1.000000e+00 : f32
    %284 = vector.broadcast %cst_134 : f32 to vector<16x3xf32>
    %285 = arith.addf %284, %283 : vector<16x3xf32>
    %286 = math.log %285 : vector<16x3xf32>
    %287 = arith.select %280, %278, %286 : vector<16x3xi1>, vector<16x3xf32>
    %288 = vector.shape_cast %287 : vector<16x3xf32> to vector<2x8x3xf32>
    %c0_135 = arith.constant 0 : index
    %c0_136 = arith.constant 0 : index
    %c0_137 = arith.constant 0 : index
    %289 = vector.load %arg13[%c0_135, %c0_136, %c0_137] : memref<2x8x3xf32, #tpu.memory_space<vmem>>, vector<2x8x3xf32>
    tpu.vector_store %arg13[%c0_135, %c0_136, %c0_137], %288 {strides = array<i32>} : memref<2x8x3xf32, #tpu.memory_space<vmem>>, vector<2x8x3xf32>,
    return
  }
}

</mosaic_0001>

<llo_original>
// kernel: tpu_custom_call.1
$region0: #{tpu_custom_call.1}
  #allocation0 [shape = 'u32[]', space=smem, size = 0x4, offset = 0x4, fixed_abs, tag = 'smem constant byte address 0x4 - core index']
  #allocation1 [shape = 'u32[144,128]{1,0:T(1,128)}', space=vmem, size = 0x12000, scoped, tag = 'internal scratch']
  %s0 = inlined_call_operand.vmem [shape: f32[2,32,8], index: 0, kind: input, shape index: {}]
  %s1 = inlined_call_operand.vmem [shape: f32[2,24,16], index: 1, kind: input, shape index: {}]
  %s2 = inlined_call_operand.vmem [shape: f32[2,1,16], index: 2, kind: input, shape index: {}]
  %s3 = inlined_call_operand.vmem [shape: f32[2,1,16], index: 3, kind: input, shape index: {}]
  %s4 = inlined_call_operand.vmem [shape: f32[2,16,8], index: 4, kind: input, shape index: {}]
  %s5 = inlined_call_operand.vmem [shape: f32[2,1,8], index: 5, kind: input, shape index: {}]
  %s6 = inlined_call_operand.vmem [shape: f32[2,1,8], index: 6, kind: input, shape index: {}]
  %s7 = inlined_call_operand.vmem [shape: f32[8,16], index: 7, kind: input, shape index: {}]
  %s8 = inlined_call_operand.vmem [shape: f32[1,16], index: 8, kind: input, shape index: {}]
  %s9 = inlined_call_operand.vmem [shape: f32[1,16], index: 9, kind: input, shape index: {}]
  %s10 = inlined_call_operand.vmem [shape: f32[16,64], index: 10, kind: input, shape index: {}]
  %s11 = inlined_call_operand.vmem [shape: f32[16,3], index: 11, kind: input, shape index: {}]
  %s12 = inlined_call_operand.vmem [shape: f32[1,3], index: 12, kind: input, shape index: {}]
  %s13 = inlined_call_operand.vmem [shape: f32[2,8,3], index: 13, kind: output, shape index: {}]
  %s14 = sld [smem:[#allocation0]]
  $region62: #{tpu_custom_call.1} parent=0
    _
  %s16 = ssub.s32 1, %s14
  %s17 = scalar_select 0, %s16, %s14
  // Predicated region
  $region2: #{tpu_custom_call.1} parent=0 // pred_check
    _
  $region3: #{tpu_custom_call.1} parent=0 // pred_check_branch
    %19 = sbr.rel (0) target = $region5
  $region4: #{tpu_custom_call.1} parent=0 // pred_region
    _
  $region5: #{tpu_custom_call.1} parent=0 // pred_fallthru
    _
  // Predicated region
  $region6: #{tpu_custom_call.1} parent=0 // pred_check
    _
  $region7: #{tpu_custom_call.1} parent=0 // pred_check_branch
    %21 = sbr.rel (0) target = $region9
  $region8: #{tpu_custom_call.1} parent=0 // pred_region
    _
  $region9: #{tpu_custom_call.1} parent=0 // pred_fallthru
    _
  // Predicated region
  $region10: #{tpu_custom_call.1} parent=0 // pred_check
    _
  $region11: #{tpu_custom_call.1} parent=0 // pred_check_branch
    %23 = sbr.rel (0) target = $region13
  $region12: #{tpu_custom_call.1} parent=0 // pred_region
    _
  $region13: #{tpu_custom_call.1} parent=0 // pred_fallthru
    _
  // Predicated region
  $region14: #{tpu_custom_call.1} parent=0 // pred_check
    _
  $region15: #{tpu_custom_call.1} parent=0 // pred_check_branch
    %25 = sbr.rel (0) target = $region17
  $region16: #{tpu_custom_call.1} parent=0 // pred_region
    _
  $region17: #{tpu_custom_call.1} parent=0 // pred_fallthru
    _
  // Predicated region
  $region18: #{tpu_custom_call.1} parent=0 // pred_check
    _
  $region19: #{tpu_custom_call.1} parent=0 // pred_check_branch
    %27 = sbr.rel (0) target = $region21
  $region20: #{tpu_custom_call.1} parent=0 // pred_region
    _
  $region21: #{tpu_custom_call.1} parent=0 // pred_fallthru
    _
  // Predicated region
  $region22: #{tpu_custom_call.1} parent=0 // pred_check
    _
  $region23: #{tpu_custom_call.1} parent=0 // pred_check_branch
    %29 = sbr.rel (0) target = $region25
  $region24: #{tpu_custom_call.1} parent=0 // pred_region
    _
  $region25: #{tpu_custom_call.1} parent=0 // pred_fallthru
    _
  // Predicated region
  $region26: #{tpu_custom_call.1} parent=0 // pred_check
    _
  $region27: #{tpu_custom_call.1} parent=0 // pred_check_branch
    %31 = sbr.rel (0) target = $region29
  $region28: #{tpu_custom_call.1} parent=0 // pred_region
    _
  $region29: #{tpu_custom_call.1} parent=0 // pred_fallthru
    _
  // Predicated region
  $region30: #{tpu_custom_call.1} parent=0 // pred_check
    _
  $region31: #{tpu_custom_call.1} parent=0 // pred_check_branch
    %33 = sbr.rel (0) target = $region33
  $region32: #{tpu_custom_call.1} parent=0 // pred_region
    _
  $region33: #{tpu_custom_call.1} parent=0 // pred_fallthru
    _
  // Predicated region
  $region34: #{tpu_custom_call.1} parent=0 // pred_check
    _
  $region35: #{tpu_custom_call.1} parent=0 // pred_check_branch
    %35 = sbr.rel (0) target = $region37
  $region36: #{tpu_custom_call.1} parent=0 // pred_region
    _
  $region37: #{tpu_custom_call.1} parent=0 // pred_fallthru
    _
  // Predicated region
  $region38: #{tpu_custom_call.1} parent=0 // pred_check
    _
  $region39: #{tpu_custom_call.1} parent=0 // pred_check_branch
    %37 = sbr.rel (0) target = $region41
  $region40: #{tpu_custom_call.1} parent=0 // pred_region
    _
  $region41: #{tpu_custom_call.1} parent=0 // pred_fallthru
    _
  // Predicated region
  $region42: #{tpu_custom_call.1} parent=0 // pred_check
    _
  $region43: #{tpu_custom_call.1} parent=0 // pred_check_branch
    %39 = sbr.rel (0) target = $region45
  $region44: #{tpu_custom_call.1} parent=0 // pred_region
    _
  $region45: #{tpu_custom_call.1} parent=0 // pred_fallthru
    _
  // Predicated region
  $region46: #{tpu_custom_call.1} parent=0 // pred_check
    _
  $region47: #{tpu_custom_call.1} parent=0 // pred_check_branch
    %41 = sbr.rel (0) target = $region49
  $region48: #{tpu_custom_call.1} parent=0 // pred_region
    _
  $region49: #{tpu_custom_call.1} parent=0 // pred_fallthru
    _
  // Predicated region
  $region50: #{tpu_custom_call.1} parent=0 // pred_check
    _
  $region51: #{tpu_custom_call.1} parent=0 // pred_check_branch
    %43 = sbr.rel (0) target = $region53
  $region52: #{tpu_custom_call.1} parent=0 // pred_region
    _
  $region53: #{tpu_custom_call.1} parent=0 // pred_fallthru
    _
  %v44 = vld [vmem:[%s0] sm:$0xff]
  %v45 = vld [vmem:[%s0 + $0x8] sm:$0xff]
  %v46 = vld [vmem:[%s0 + $0x10] sm:$0xff]
  %v47 = vld [vmem:[%s0 + $0x18] sm:$0xff]
  %v48 = vld [vmem:[%s0 + $0x20] sm:$0xff]
  %v49 = vld [vmem:[%s0 + $0x28] sm:$0xff]
  %v50 = vld [vmem:[%s0 + $0x30] sm:$0xff]
  %v51 = vld [vmem:[%s0 + $0x38] sm:$0xff]
  %v52 = vmul.f32 %v44, 0.5
  %v53 = vmul.f32 %v45, 0.5
  %v54 = vmul.f32 %v46, 0.5
  %v55 = vmul.f32 %v47, 0.5
  %v56 = vmul.f32 %v48, 0.5
  %v57 = vmul.f32 %v49, 0.5
  %v58 = vmul.f32 %v50, 0.5
  %v59 = vmul.f32 %v51, 0.5
  %v60 = vmul.f32 %v44, 0.70710677
  %v61 = vmul.f32 %v45, 0.70710677
  %v62 = vmul.f32 %v46, 0.70710677
  %v63 = vmul.f32 %v47, 0.70710677
  %v64 = vmul.f32 %v48, 0.70710677
  %v65 = vmul.f32 %v49, 0.70710677
  %v66 = vmul.f32 %v50, 0.70710677
  %v67 = vmul.f32 %v51, 0.70710677
  %v68 = vand.u32 2147483647, %v60
  %v69 = vand.u32 2147483647, %v61
  %v70 = vand.u32 2147483647, %v62
  %v71 = vand.u32 2147483647, %v63
  %v72 = vand.u32 2147483647, %v64
  %v73 = vand.u32 2147483647, %v65
  %v74 = vand.u32 2147483647, %v66
  %v75 = vand.u32 2147483647, %v67
  %v76 = vmul.f32 %v68, 0.3275911
  %v77 = vmul.f32 %v69, 0.3275911
  %v78 = vmul.f32 %v70, 0.3275911
  %v79 = vmul.f32 %v71, 0.3275911
  %v80 = vmul.f32 %v72, 0.3275911
  %v81 = vmul.f32 %v73, 0.3275911
  %v82 = vmul.f32 %v74, 0.3275911
  %v83 = vmul.f32 %v75, 0.3275911
  %v84 = vadd.f32 %v76, 1.0
  %v85 = vadd.f32 %v77, 1.0
  %v86 = vadd.f32 %v78, 1.0
  %v87 = vadd.f32 %v79, 1.0
  %v88 = vadd.f32 %v80, 1.0
  %v89 = vadd.f32 %v81, 1.0
  %v90 = vadd.f32 %v82, 1.0
  %v91 = vadd.f32 %v83, 1.0
  %v92 = vrcp.pop %v84
  %v93 = vmul.f32 1.0, %v92
  %v94 = vrcp.pop %v85
  %v95 = vmul.f32 1.0, %v94
  %v96 = vrcp.pop %v86
  %v97 = vmul.f32 1.0, %v96
  %v98 = vrcp.pop %v87
  %v99 = vmul.f32 1.0, %v98
  %v100 = vrcp.pop %v88
  %v101 = vmul.f32 1.0, %v100
  %v102 = vrcp.pop %v89
  %v103 = vmul.f32 1.0, %v102
  %v104 = vrcp.pop %v90
  %v105 = vmul.f32 1.0, %v104
  %v106 = vrcp.pop %v91
  %v107 = vmul.f32 1.0, %v106
  %v108 = vmul.f32 %v93, 1.0614054
  %v109 = vmul.f32 %v95, 1.0614054
  %v110 = vmul.f32 %v97, 1.0614054
  %v111 = vmul.f32 %v99, 1.0614054
  %v112 = vmul.f32 %v101, 1.0614054
  %v113 = vmul.f32 %v103, 1.0614054
  %v114 = vmul.f32 %v105, 1.0614054
  %v115 = vmul.f32 %v107, 1.0614054
  %v116 = vsub.f32 %v108, 1.4531521
  %v117 = vsub.f32 %v109, 1.4531521
  %v118 = vsub.f32 %v110, 1.4531521
  %v119 = vsub.f32 %v111, 1.4531521
  %v120 = vsub.f32 %v112, 1.4531521
  %v121 = vsub.f32 %v113, 1.4531521
  %v122 = vsub.f32 %v114, 1.4531521
  %v123 = vsub.f32 %v115, 1.4531521
  %v124 = vmul.f32 %v116, %v93
  %v125 = vmul.f32 %v117, %v95
  %v126 = vmul.f32 %v118, %v97
  %v127 = vmul.f32 %v119, %v99
  %v128 = vmul.f32 %v120, %v101
  %v129 = vmul.f32 %v121, %v103
  %v130 = vmul.f32 %v122, %v105
  %v131 = vmul.f32 %v123, %v107
  %v132 = vadd.f32 %v124, 1.4214138
  %v133 = vadd.f32 %v125, 1.4214138
  %v134 = vadd.f32 %v126, 1.4214138
  %v135 = vadd.f32 %v127, 1.4214138
  %v136 = vadd.f32 %v128, 1.4214138
  %v137 = vadd.f32 %v129, 1.4214138
  %v138 = vadd.f32 %v130, 1.4214138
  %v139 = vadd.f32 %v131, 1.4214138
  %v140 = vmul.f32 %v132, %v93
  %v141 = vmul.f32 %v133, %v95
  %v142 = vmul.f32 %v134, %v97
  %v143 = vmul.f32 %v135, %v99
  %v144 = vmul.f32 %v136, %v101
  %v145 = vmul.f32 %v137, %v103
  %v146 = vmul.f32 %v138, %v105
  %v147 = vmul.f32 %v139, %v107
  %v148 = vsub.f32 %v140, 0.28449672
  %v149 = vsub.f32 %v141, 0.28449672
  %v150 = vsub.f32 %v142, 0.28449672
  %v151 = vsub.f32 %v143, 0.28449672
  %v152 = vsub.f32 %v144, 0.28449672
  %v153 = vsub.f32 %v145, 0.28449672
  %v154 = vsub.f32 %v146, 0.28449672
  %v155 = vsub.f32 %v147, 0.28449672
  %v156 = vmul.f32 %v148, %v93
  %v157 = vmul.f32 %v149, %v95
  %v158 = vmul.f32 %v150, %v97
  %v159 = vmul.f32 %v151, %v99
  %v160 = vmul.f32 %v152, %v101
  %v161 = vmul.f32 %v153, %v103
  %v162 = vmul.f32 %v154, %v105
  %v163 = vmul.f32 %v155, %v107
  %v164 = vadd.f32 %v156, 0.2548296
  %v165 = vadd.f32 %v157, 0.2548296
  %v166 = vadd.f32 %v158, 0.2548296
  %v167 = vadd.f32 %v159, 0.2548296
  %v168 = vadd.f32 %v160, 0.2548296
  %v169 = vadd.f32 %v161, 0.2548296
  %v170 = vadd.f32 %v162, 0.2548296
  %v171 = vadd.f32 %v163, 0.2548296
  %v172 = vmul.f32 %v164, %v93
  %v173 = vmul.f32 %v165, %v95
  %v174 = vmul.f32 %v166, %v97
  %v175 = vmul.f32 %v167, %v99
  %v176 = vmul.f32 %v168, %v101
  %v177 = vmul.f32 %v169, %v103
  %v178 = vmul.f32 %v170, %v105
  %v179 = vmul.f32 %v171, %v107
  %v180 = vsub.f32 0.0, %v68
  %v181 = vsub.f32 0.0, %v69
  %v182 = vsub.f32 0.0, %v70
  %v183 = vsub.f32 0.0, %v71
  %v184 = vsub.f32 0.0, %v72
  %v185 = vsub.f32 0.0, %v73
  %v186 = vsub.f32 0.0, %v74
  %v187 = vsub.f32 0.0, %v75
  %v188 = vmul.f32 %v180, %v68
  %v189 = vmul.f32 %v181, %v69
  %v190 = vmul.f32 %v182, %v70
  %v191 = vmul.f32 %v183, %v71
  %v192 = vmul.f32 %v184, %v72
  %v193 = vmul.f32 %v185, %v73
  %v194 = vmul.f32 %v186, %v74
  %v195 = vmul.f32 %v187, %v75
  %v196 = vmul.f32 %v188, 1.442695
  %v197 = vpow.pop %v196
  %v198 = vmul.f32 %v189, 1.442695
  %v199 = vpow.pop %v198
  %v200 = vmul.f32 %v190, 1.442695
  %v201 = vpow.pop %v200
  %v202 = vmul.f32 %v191, 1.442695
  %v203 = vpow.pop %v202
  %v204 = vmul.f32 %v192, 1.442695
  %v205 = vpow.pop %v204
  %v206 = vmul.f32 %v193, 1.442695
  %v207 = vpow.pop %v206
  %v208 = vmul.f32 %v194, 1.442695
  %v209 = vpow.pop %v208
  %v210 = vmul.f32 %v195, 1.442695
  %v211 = vpow.pop %v210
  %v212 = vmul.f32 %v172, %v197
  %v213 = vmul.f32 %v173, %v199
  %v214 = vmul.f32 %v174, %v201
  %v215 = vmul.f32 %v175, %v203
  %v216 = vmul.f32 %v176, %v205
  %v217 = vmul.f32 %v177, %v207
  %v218 = vmul.f32 %v178, %v209
  %v219 = vmul.f32 %v179, %v211
  %v220 = vsub.f32 1.0, %v212
  %v221 = vsub.f32 1.0, %v213
  %v222 = vsub.f32 1.0, %v214
  %v223 = vsub.f32 1.0, %v215
  %v224 = vsub.f32 1.0, %v216
  %v225 = vsub.f32 1.0, %v217
  %v226 = vsub.f32 1.0, %v218
  %v227 = vsub.f32 1.0, %v219
  %vm228 = vcmp.ge.f32.partialorder %v60, 0.0
  %vm229 = vcmp.ge.f32.partialorder %v61, 0.0
  %vm230 = vcmp.ge.f32.partialorder %v62, 0.0
  %vm231 = vcmp.ge.f32.partialorder %v63, 0.0
  %vm232 = vcmp.ge.f32.partialorder %v64, 0.0
  %vm233 = vcmp.ge.f32.partialorder %v65, 0.0
  %vm234 = vcmp.ge.f32.partialorder %v66, 0.0
  %vm235 = vcmp.ge.f32.partialorder %v67, 0.0
  %v236 = vsub.f32 0.0, %v220
  %v237 = vsub.f32 0.0, %v221
  %v238 = vsub.f32 0.0, %v222
  %v239 = vsub.f32 0.0, %v223
  %v240 = vsub.f32 0.0, %v224
  %v241 = vsub.f32 0.0, %v225
  %v242 = vsub.f32 0.0, %v226
  %v243 = vsub.f32 0.0, %v227
  %v244 = vsel %vm228, %v220, %v236
  %v245 = vsel %vm229, %v221, %v237
  %v246 = vsel %vm230, %v222, %v238
  %v247 = vsel %vm231, %v223, %v239
  %v248 = vsel %vm232, %v224, %v240
  %v249 = vsel %vm233, %v225, %v241
  %v250 = vsel %vm234, %v226, %v242
  %v251 = vsel %vm235, %v227, %v243
  %v252 = vadd.f32 %v244, 1.0
  %v253 = vadd.f32 %v245, 1.0
  %v254 = vadd.f32 %v246, 1.0
  %v255 = vadd.f32 %v247, 1.0
  %v256 = vadd.f32 %v248, 1.0
  %v257 = vadd.f32 %v249, 1.0
  %v258 = vadd.f32 %v250, 1.0
  %v259 = vadd.f32 %v251, 1.0
  %v260 = vmul.f32 %v52, %v252
  %v261 = vmul.f32 %v53, %v253
  %v262 = vmul.f32 %v54, %v254
  %v263 = vmul.f32 %v55, %v255
  %v264 = vmul.f32 %v56, %v256
  %v265 = vmul.f32 %v57, %v257
  %v266 = vmul.f32 %v58, %v258
  %v267 = vmul.f32 %v59, %v259
  %vm276 = vcmask 1046528
  %v277 = vrot.slane %v260, 1
  %v278 = vrot.slane %v261, 1
  %v279 = vsel %vm276, %v277, %v278
  %v280 = vrot.slane %v262, 1
  %v281 = vsel %vm276, %v278, %v280
  %v282 = vrot.slane %v263, 1
  %v283 = vsel %vm276, %v280, %v282
  %v284 = vrot.slane %v264, 1
  %v285 = vrot.slane %v265, 1
  %v286 = vsel %vm276, %v284, %v285
  %v287 = vrot.slane %v266, 1
  %v288 = vsel %vm276, %v285, %v287
  %v289 = vrot.slane %v267, 1
  %v290 = vsel %vm276, %v287, %v289
  %291 = vrot.lane.b32.xlu0 %v277, 8
  %v292 = vpop.permute.xlu0 %291
  %293 = vrot.lane.b32.xlu0 %v279, 8
  %v294 = vpop.permute.xlu0 %293
  %295 = vrot.lane.b32.xlu0 %v281, 8
  %v296 = vpop.permute.xlu0 %295
  %297 = vrot.lane.b32.xlu0 %v283, 8
  %v298 = vpop.permute.xlu0 %297
  %299 = vrot.lane.b32.xlu0 %v282, 8
  %v300 = vpop.permute.xlu0 %299
  %301 = vrot.lane.b32.xlu0 %v284, 8
  %v302 = vpop.permute.xlu0 %301
  %303 = vrot.lane.b32.xlu0 %v286, 8
  %v304 = vpop.permute.xlu0 %303
  %305 = vrot.lane.b32.xlu0 %v288, 8
  %v306 = vpop.permute.xlu0 %305
  %307 = vrot.lane.b32.xlu0 %v290, 8
  %v308 = vpop.permute.xlu0 %307
  %309 = vrot.lane.b32.xlu0 %v289, 8
  %v310 = vpop.permute.xlu0 %309
  %vm322 = vcmask 1045504
  %v323 = vrot.slane %v260, 2
  %v324 = vrot.slane %v261, 2
  %v325 = vsel %vm322, %v323, %v324
  %v326 = vrot.slane %v262, 2
  %v327 = vsel %vm322, %v324, %v326
  %v328 = vrot.slane %v263, 2
  %v329 = vsel %vm322, %v326, %v328
  %v330 = vrot.slane 0.0, 2
  %v331 = vsel %vm322, %v328, %v330
  %v332 = vrot.slane %v264, 2
  %v333 = vrot.slane %v265, 2
  %v334 = vsel %vm322, %v332, %v333
  %v335 = vrot.slane %v266, 2
  %v336 = vsel %vm322, %v333, %v335
  %v337 = vrot.slane %v267, 2
  %v338 = vsel %vm322, %v335, %v337
  %v339 = vsel %vm322, %v337, %v330
  %340 = vrot.lane.b32.xlu0 %v323, 16
  %v341 = vpop.permute.xlu0 %340
  %342 = vrot.lane.b32.xlu0 %v325, 16
  %v343 = vpop.permute.xlu0 %342
  %344 = vrot.lane.b32.xlu0 %v327, 16
  %v345 = vpop.permute.xlu0 %344
  %346 = vrot.lane.b32.xlu0 %v329, 16
  %v347 = vpop.permute.xlu0 %346
  %348 = vrot.lane.b32.xlu0 %v331, 16
  %v349 = vpop.permute.xlu0 %348
  %350 = vrot.lane.b32.xlu0 %v332, 16
  %v351 = vpop.permute.xlu0 %350
  %352 = vrot.lane.b32.xlu0 %v334, 16
  %v353 = vpop.permute.xlu0 %352
  %354 = vrot.lane.b32.xlu0 %v336, 16
  %v355 = vpop.permute.xlu0 %354
  %356 = vrot.lane.b32.xlu0 %v338, 16
  %v357 = vpop.permute.xlu0 %356
  %358 = vrot.lane.b32.xlu0 %v339, 16
  %v359 = vpop.permute.xlu0 %358
  %vm370 = vcmask 64512
  %v371 = vsel %vm370, 0.0, %v292
  %v372 = vsel %vm370, %v260, %v294
  %v373 = vsel %vm370, %v261, %v296
  %v374 = vsel %vm370, %v262, %v298
  %v375 = vsel %vm370, %v263, %v300
  %v376 = vsel %vm370, 0.0, %v302
  %v377 = vsel %vm370, %v264, %v304
  %v378 = vsel %vm370, %v265, %v306
  %v379 = vsel %vm370, %v266, %v308
  %v380 = vsel %vm370, %v267, %v310
  %vm381 = vcmask 130048
  %v382 = vsel %vm381, %v371, %v341
  %v383 = vsel %vm381, %v372, %v343
  %v384 = vsel %vm381, %v373, %v345
  %v385 = vsel %vm381, %v374, %v347
  %v386 = vsel %vm381, %v375, %v349
  %v387 = vsel %vm381, %v376, %v351
  %v388 = vsel %vm381, %v377, %v353
  %v389 = vsel %vm381, %v378, %v355
  %v390 = vsel %vm381, %v379, %v357
  %v391 = vsel %vm381, %v380, %v359
  %vm402 = vcmask 1040384
  %v403 = vrot.slane %v382, 7
  %v404 = vrot.slane %v383, 7
  %v405 = vsel %vm402, %v403, %v404
  %v406 = vrot.slane %v384, 7
  %v407 = vsel %vm402, %v404, %v406
  %v408 = vrot.slane %v385, 7
  %v409 = vsel %vm402, %v406, %v408
  %v410 = vrot.slane %v386, 7
  %v411 = vsel %vm402, %v408, %v410
  %v412 = vrot.slane %v387, 7
  %v413 = vrot.slane %v388, 7
  %v414 = vsel %vm402, %v412, %v413
  %v415 = vrot.slane %v389, 7
  %v416 = vsel %vm402, %v413, %v415
  %v417 = vrot.slane %v390, 7
  %v418 = vsel %vm402, %v415, %v417
  %v419 = vrot.slane %v391, 7
  %v420 = vsel %vm402, %v417, %v419
  %v421 = vld [vmem:[%s1] sm:$0xff]
  %v422 = vld [vmem:[%s1 + $0x8] sm:$0xff]
  %v423 = vld [vmem:[%s1 + $0x10] sm:$0xff]
  %vm424 = vcmask 195584
  %v425 = vsel %vm424, %v405, 0
  %v427 = vsel %vm424, %v407, 0
  %v429 = vsel %vm424, %v409, 0
  %v431 = vsel %vm424, %v411, 0
  %v433 = vsel %vm424, %v414, 0
  %v435 = vsel %vm424, %v416, 0
  %v437 = vsel %vm424, %v418, 0
  %v439 = vsel %vm424, %v420, 0
  %441 = vmatprep.subr.mxu0 0.0
  %442 = vmatpush1.msra.mxu0 %v421
  %443 = vmatprep.subr.mxu0 0.0
  %444 = vmatpush1.msra.mxu0 %v422
  %445 = vmatprep.subr.mxu0 0.0
  %446 = vmatpush1.msra.mxu0 %v423
  %447 = vmatprep.subr.mxu0 0.0
  %448 = vmatpush1.msra.mxu0 0.0
  %449 = vmatprep.subr.mxu0 0.0
  %450 = vmatpush1.msra.mxu0 0.0
  %451 = vmatprep.subr.mxu0 0.0
  %452 = vmatpush1.msra.mxu0 0.0
  %453 = vmatprep.subr.mxu0 0.0
  %454 = vmatpush1.msra.mxu0 0.0
  %455 = vmatprep.subr.mxu0 0.0
  %456 = vmatpush1.msra.mxu0 0.0
  %457 = vmatprep.subr.mxu0 0.0
  %458 = vmatpush1.msra.mxu0 0.0
  %459 = vmatprep.subr.mxu0 0.0
  %460 = vmatpush1.msra.mxu0 0.0
  %461 = vmatprep.subr.mxu0 0.0
  %462 = vmatpush1.msra.mxu0 0.0
  %463 = vmatprep.subr.mxu0 0.0
  %464 = vmatpush1.msra.mxu0 0.0
  %465 = vmatprep.subr.mxu0 0.0
  %466 = vmatpush1.msra.mxu0 0.0
  %467 = vmatprep.subr.mxu0 0.0
  %468 = vmatpush1.msra.mxu0 0.0
  %469 = vmatprep.subr.mxu0 0.0
  %470 = vmatpush1.msra.mxu0 0.0
  %471 = vmatprep.subr.mxu0 0.0
  %472 = vmatpush1.msra.mxu0 0.0
  %473 = vmatprep.subr.mxu0 0.0
  %474 = vmatpush1.msra.mxu0 0.0
  %475 = vmatprep.subr.mxu0 0.0
  %476 = vmatpush1.msra.mxu0 0.0
  %477 = vmatprep.subr.mxu0 0.0
  %478 = vmatpush1.msra.mxu0 0.0
  %479 = vmatprep.subr.mxu0 0.0
  %480 = vmatpush1.msra.mxu0 0.0
  %481 = vmatprep.subr.mxu0 0.0
  %482 = vmatpush1.msra.mxu0 0.0
  %483 = vmatprep.subr.mxu0 0.0
  %484 = vmatpush1.msra.mxu0 0.0
  %485 = vmatprep.subr.mxu0 0.0
  %486 = vmatpush1.msra.mxu0 0.0
  %487 = vmatprep.subr.mxu0 0.0
  %488 = vmatpush1.msra.mxu0 0.0
  %489 = vmatprep.subr.mxu0 0.0
  %490 = vmatpush1.msra.mxu0 0.0
  %491 = vmatprep.subr.mxu0 0.0
  %492 = vmatpush1.msra.mxu0 0.0
  %493 = vmatprep.subr.mxu0 0.0
  %494 = vmatpush1.msra.mxu0 0.0
  %495 = vmatprep.subr.mxu0 0.0
  %496 = vmatpush1.msra.mxu0 0.0
  %497 = vmatprep.subr.mxu0 0.0
  %498 = vmatpush1.msra.mxu0 0.0
  %499 = vmatprep.subr.mxu0 0.0
  %500 = vmatpush1.msra.mxu0 0.0
  %501 = vmatprep.subr.mxu0 0.0
  %502 = vmatpush1.msra.mxu0 0.0
  %503 = vmatprep.subr.mxu0 0.0
  %504 = vmatpush1.msra.mxu0 0.0
  %505 = vmatprep.mubr.f32.mxu0 0.0
  %506 = vmatmul.mubr.f32.gmra.mrb[0].mxu0 %v425
  %v507 = vpop.f32.mrb[0].mxu0
  %v508 = vadd.f32 0.0, %v507
  %v509 = vpop.f32.mrb[0].mxu0
  %510 = vmatprep.mubr.f32.mxu0 0.0
  %511 = vmatmul.mubr.f32.gmra.mrb[0].mxu0 %v427
  %v512 = vpop.f32.mrb[0].mxu0
  %v513 = vadd.f32 0.0, %v512
  %v514 = vpop.f32.mrb[0].mxu0
  %515 = vmatprep.mubr.f32.mxu0 0.0
  %516 = vmatmul.mubr.f32.gmra.mrb[0].mxu0 %v429
  %v517 = vpop.f32.mrb[0].mxu0
  %v518 = vadd.f32 0.0, %v517
  %v519 = vpop.f32.mrb[0].mxu0
  %520 = vmatprep.mubr.f32.mxu0 0.0
  %521 = vmatmul.mubr.f32.gmra.mrb[0].mxu0 %v431
  %v522 = vpop.f32.mrb[0].mxu0
  %v523 = vadd.f32 0.0, %v522
  %v524 = vpop.f32.mrb[0].mxu0
  %525 = vmatprep.mubr.f32.mxu0 0.0
  %526 = vmatmul.mubr.f32.gmra.mrb[0].mxu0 %v433
  %v527 = vpop.f32.mrb[0].mxu0
  %v528 = vadd.f32 0.0, %v527
  %v529 = vpop.f32.mrb[0].mxu0
  %530 = vmatprep.mubr.f32.mxu0 0.0
  %531 = vmatmul.mubr.f32.gmra.mrb[0].mxu0 %v435
  %v532 = vpop.f32.mrb[0].mxu0
  %v533 = vadd.f32 0.0, %v532
  %v534 = vpop.f32.mrb[0].mxu0
  %535 = vmatprep.mubr.f32.mxu0 0.0
  %536 = vmatmul.mubr.f32.gmra.mrb[0].mxu0 %v437
  %v537 = vpop.f32.mrb[0].mxu0
  %v538 = vadd.f32 0.0, %v537
  %v539 = vpop.f32.mrb[0].mxu0
  %540 = vmatprep.mubr.f32.mxu0 0.0
  %541 = vmatmul.mubr.f32.gmra.mrb[0].mxu0 %v439
  %v542 = vpop.f32.mrb[0].mxu0
  %v543 = vadd.f32 0.0, %v542
  %v544 = vpop.f32.mrb[0].mxu0
  %545 = vdwg.mxu0
  %v546 = vld [vmem:[%s2] sm:$0x1]
  %v548 = vlaneseq
  %v549 = vshrl.u32 %v548, 7
  %v550 = vsub.s32 0, %v549
  %v551 = vrot.slane %v546, %v550
  %v553 = vmul.f32 %v508, %v551
  %v554 = vmul.f32 %v513, %v551
  %v555 = vmul.f32 %v518, %v551
  %v556 = vmul.f32 %v523, %v551
  %v557 = vmul.f32 %v528, %v551
  %v558 = vmul.f32 %v533, %v551
  %v559 = vmul.f32 %v538, %v551
  %v560 = vmul.f32 %v543, %v551
  %v561 = vld [vmem:[%s3] sm:$0x1]
  %v563 = vlaneseq
  %v564 = vshrl.u32 %v563, 7
  %v565 = vsub.s32 0, %v564
  %v566 = vrot.slane %v561, %v565
  %v568 = vadd.f32 %v553, %v566
  %v569 = vadd.f32 %v554, %v566
  %v570 = vadd.f32 %v555, %v566
  %v571 = vadd.f32 %v556, %v566
  %v572 = vadd.f32 %v557, %v566
  %v573 = vadd.f32 %v558, %v566
  %v574 = vadd.f32 %v559, %v566
  %v575 = vadd.f32 %v560, %v566
  %v576 = vmul.f32 %v568, 0.5
  %v577 = vmul.f32 %v569, 0.5
  %v578 = vmul.f32 %v570, 0.5
  %v579 = vmul.f32 %v571, 0.5
  %v580 = vmul.f32 %v572, 0.5
  %v581 = vmul.f32 %v573, 0.5
  %v582 = vmul.f32 %v574, 0.5
  %v583 = vmul.f32 %v575, 0.5
  %v584 = vmul.f32 %v568, 0.70710677
  %v585 = vmul.f32 %v569, 0.70710677
  %v586 = vmul.f32 %v570, 0.70710677
  %v587 = vmul.f32 %v571, 0.70710677
  %v588 = vmul.f32 %v572, 0.70710677
  %v589 = vmul.f32 %v573, 0.70710677
  %v590 = vmul.f32 %v574, 0.70710677
  %v591 = vmul.f32 %v575, 0.70710677
  %v592 = vand.u32 2147483647, %v584
  %v593 = vand.u32 2147483647, %v585
  %v594 = vand.u32 2147483647, %v586
  %v595 = vand.u32 2147483647, %v587
  %v596 = vand.u32 2147483647, %v588
  %v597 = vand.u32 2147483647, %v589
  %v598 = vand.u32 2147483647, %v590
  %v599 = vand.u32 2147483647, %v591
  %v600 = vmul.f32 %v592, 0.3275911
  %v601 = vmul.f32 %v593, 0.3275911
  %v602 = vmul.f32 %v594, 0.3275911
  %v603 = vmul.f32 %v595, 0.3275911
  %v604 = vmul.f32 %v596, 0.3275911
  %v605 = vmul.f32 %v597, 0.3275911
  %v606 = vmul.f32 %v598, 0.3275911
  %v607 = vmul.f32 %v599, 0.3275911
  %v608 = vadd.f32 %v600, 1.0
  %v609 = vadd.f32 %v601, 1.0
  %v610 = vadd.f32 %v602, 1.0
  %v611 = vadd.f32 %v603, 1.0
  %v612 = vadd.f32 %v604, 1.0
  %v613 = vadd.f32 %v605, 1.0
  %v614 = vadd.f32 %v606, 1.0
  %v615 = vadd.f32 %v607, 1.0
  %v616 = vrcp.pop %v608
  %v617 = vmul.f32 1.0, %v616
  %v618 = vrcp.pop %v609
  %v619 = vmul.f32 1.0, %v618
  %v620 = vrcp.pop %v610
  %v621 = vmul.f32 1.0, %v620
  %v622 = vrcp.pop %v611
  %v623 = vmul.f32 1.0, %v622
  %v624 = vrcp.pop %v612
  %v625 = vmul.f32 1.0, %v624
  %v626 = vrcp.pop %v613
  %v627 = vmul.f32 1.0, %v626
  %v628 = vrcp.pop %v614
  %v629 = vmul.f32 1.0, %v628
  %v630 = vrcp.pop %v615
  %v631 = vmul.f32 1.0, %v630
  %v632 = vmul.f32 %v617, 1.0614054
  %v633 = vmul.f32 %v619, 1.0614054
  %v634 = vmul.f32 %v621, 1.0614054
  %v635 = vmul.f32 %v623, 1.0614054
  %v636 = vmul.f32 %v625, 1.0614054
  %v637 = vmul.f32 %v627, 1.0614054
  %v638 = vmul.f32 %v629, 1.0614054
  %v639 = vmul.f32 %v631, 1.0614054
  %v640 = vsub.f32 %v632, 1.4531521
  %v641 = vsub.f32 %v633, 1.4531521
  %v642 = vsub.f32 %v634, 1.4531521
  %v643 = vsub.f32 %v635, 1.4531521
  %v644 = vsub.f32 %v636, 1.4531521
  %v645 = vsub.f32 %v637, 1.4531521
  %v646 = vsub.f32 %v638, 1.4531521
  %v647 = vsub.f32 %v639, 1.4531521
  %v648 = vmul.f32 %v640, %v617
  %v649 = vmul.f32 %v641, %v619
  %v650 = vmul.f32 %v642, %v621
  %v651 = vmul.f32 %v643, %v623
  %v652 = vmul.f32 %v644, %v625
  %v653 = vmul.f32 %v645, %v627
  %v654 = vmul.f32 %v646, %v629
  %v655 = vmul.f32 %v647, %v631
  %v656 = vadd.f32 %v648, 1.4214138
  %v657 = vadd.f32 %v649, 1.4214138
  %v658 = vadd.f32 %v650, 1.4214138
  %v659 = vadd.f32 %v651, 1.4214138
  %v660 = vadd.f32 %v652, 1.4214138
  %v661 = vadd.f32 %v653, 1.4214138
  %v662 = vadd.f32 %v654, 1.4214138
  %v663 = vadd.f32 %v655, 1.4214138
  %v664 = vmul.f32 %v656, %v617
  %v665 = vmul.f32 %v657, %v619
  %v666 = vmul.f32 %v658, %v621
  %v667 = vmul.f32 %v659, %v623
  %v668 = vmul.f32 %v660, %v625
  %v669 = vmul.f32 %v661, %v627
  %v670 = vmul.f32 %v662, %v629
  %v671 = vmul.f32 %v663, %v631
  %v672 = vsub.f32 %v664, 0.28449672
  %v673 = vsub.f32 %v665, 0.28449672
  %v674 = vsub.f32 %v666, 0.28449672
  %v675 = vsub.f32 %v667, 0.28449672
  %v676 = vsub.f32 %v668, 0.28449672
  %v677 = vsub.f32 %v669, 0.28449672
  %v678 = vsub.f32 %v670, 0.28449672
  %v679 = vsub.f32 %v671, 0.28449672
  %v680 = vmul.f32 %v672, %v617
  %v681 = vmul.f32 %v673, %v619
  %v682 = vmul.f32 %v674, %v621
  %v683 = vmul.f32 %v675, %v623
  %v684 = vmul.f32 %v676, %v625
  %v685 = vmul.f32 %v677, %v627
  %v686 = vmul.f32 %v678, %v629
  %v687 = vmul.f32 %v679, %v631
  %v688 = vadd.f32 %v680, 0.2548296
  %v689 = vadd.f32 %v681, 0.2548296
  %v690 = vadd.f32 %v682, 0.2548296
  %v691 = vadd.f32 %v683, 0.2548296
  %v692 = vadd.f32 %v684, 0.2548296
  %v693 = vadd.f32 %v685, 0.2548296
  %v694 = vadd.f32 %v686, 0.2548296
  %v695 = vadd.f32 %v687, 0.2548296
  %v696 = vmul.f32 %v688, %v617
  %v697 = vmul.f32 %v689, %v619
  %v698 = vmul.f32 %v690, %v621
  %v699 = vmul.f32 %v691, %v623
  %v700 = vmul.f32 %v692, %v625
  %v701 = vmul.f32 %v693, %v627
  %v702 = vmul.f32 %v694, %v629
  %v703 = vmul.f32 %v695, %v631
  %v704 = vsub.f32 0.0, %v592
  %v705 = vsub.f32 0.0, %v593
  %v706 = vsub.f32 0.0, %v594
  %v707 = vsub.f32 0.0, %v595
  %v708 = vsub.f32 0.0, %v596
  %v709 = vsub.f32 0.0, %v597
  %v710 = vsub.f32 0.0, %v598
  %v711 = vsub.f32 0.0, %v599
  %v712 = vmul.f32 %v704, %v592
  %v713 = vmul.f32 %v705, %v593
  %v714 = vmul.f32 %v706, %v594
  %v715 = vmul.f32 %v707, %v595
  %v716 = vmul.f32 %v708, %v596
  %v717 = vmul.f32 %v709, %v597
  %v718 = vmul.f32 %v710, %v598
  %v719 = vmul.f32 %v711, %v599
  %v720 = vmul.f32 %v712, 1.442695
  %v721 = vpow.pop %v720
  %v722 = vmul.f32 %v713, 1.442695
  %v723 = vpow.pop %v722
  %v724 = vmul.f32 %v714, 1.442695
  %v725 = vpow.pop %v724
  %v726 = vmul.f32 %v715, 1.442695
  %v727 = vpow.pop %v726
  %v728 = vmul.f32 %v716, 1.442695
  %v729 = vpow.pop %v728
  %v730 = vmul.f32 %v717, 1.442695
  %v731 = vpow.pop %v730
  %v732 = vmul.f32 %v718, 1.442695
  %v733 = vpow.pop %v732
  %v734 = vmul.f32 %v719, 1.442695
  %v735 = vpow.pop %v734
  %v736 = vmul.f32 %v696, %v721
  %v737 = vmul.f32 %v697, %v723
  %v738 = vmul.f32 %v698, %v725
  %v739 = vmul.f32 %v699, %v727
  %v740 = vmul.f32 %v700, %v729
  %v741 = vmul.f32 %v701, %v731
  %v742 = vmul.f32 %v702, %v733
  %v743 = vmul.f32 %v703, %v735
  %v744 = vsub.f32 1.0, %v736
  %v745 = vsub.f32 1.0, %v737
  %v746 = vsub.f32 1.0, %v738
  %v747 = vsub.f32 1.0, %v739
  %v748 = vsub.f32 1.0, %v740
  %v749 = vsub.f32 1.0, %v741
  %v750 = vsub.f32 1.0, %v742
  %v751 = vsub.f32 1.0, %v743
  %vm752 = vcmp.ge.f32.partialorder %v584, 0.0
  %vm753 = vcmp.ge.f32.partialorder %v585, 0.0
  %vm754 = vcmp.ge.f32.partialorder %v586, 0.0
  %vm755 = vcmp.ge.f32.partialorder %v587, 0.0
  %vm756 = vcmp.ge.f32.partialorder %v588, 0.0
  %vm757 = vcmp.ge.f32.partialorder %v589, 0.0
  %vm758 = vcmp.ge.f32.partialorder %v590, 0.0
  %vm759 = vcmp.ge.f32.partialorder %v591, 0.0
  %v760 = vsub.f32 0.0, %v744
  %v761 = vsub.f32 0.0, %v745
  %v762 = vsub.f32 0.0, %v746
  %v763 = vsub.f32 0.0, %v747
  %v764 = vsub.f32 0.0, %v748
  %v765 = vsub.f32 0.0, %v749
  %v766 = vsub.f32 0.0, %v750
  %v767 = vsub.f32 0.0, %v751
  %v768 = vsel %vm752, %v744, %v760
  %v769 = vsel %vm753, %v745, %v761
  %v770 = vsel %vm754, %v746, %v762
  %v771 = vsel %vm755, %v747, %v763
  %v772 = vsel %vm756, %v748, %v764
  %v773 = vsel %vm757, %v749, %v765
  %v774 = vsel %vm758, %v750, %v766
  %v775 = vsel %vm759, %v751, %v767
  %v776 = vadd.f32 %v768, 1.0
  %v777 = vadd.f32 %v769, 1.0
  %v778 = vadd.f32 %v770, 1.0
  %v779 = vadd.f32 %v771, 1.0
  %v780 = vadd.f32 %v772, 1.0
  %v781 = vadd.f32 %v773, 1.0
  %v782 = vadd.f32 %v774, 1.0
  %v783 = vadd.f32 %v775, 1.0
  %v784 = vmul.f32 %v576, %v776
  %v785 = vmul.f32 %v577, %v777
  %v786 = vmul.f32 %v578, %v778
  %v787 = vmul.f32 %v579, %v779
  %v788 = vmul.f32 %v580, %v780
  %v789 = vmul.f32 %v581, %v781
  %v790 = vmul.f32 %v582, %v782
  %v791 = vmul.f32 %v583, %v783
  %v792 = vld [vmem:[%s4] sm:$0xff]
  %v793 = vld [vmem:[%s4 + $0x8] sm:$0xff]
  %v795 = vsel %vm381, %v784, 0
  %v798 = vsel %vm381, %v785, 0
  %v801 = vsel %vm381, %v786, 0
  %v804 = vsel %vm381, %v787, 0
  %v807 = vsel %vm381, %v788, 0
  %v810 = vsel %vm381, %v789, 0
  %v813 = vsel %vm381, %v790, 0
  %v816 = vsel %vm381, %v791, 0
  %818 = vmatprep.subr.mxu0 0.0
  %819 = vmatpush1.msra.mxu0 %v792
  %820 = vmatprep.subr.mxu0 0.0
  %821 = vmatpush1.msra.mxu0 %v793
  %822 = vmatprep.subr.mxu0 0.0
  %823 = vmatpush1.msra.mxu0 0.0
  %824 = vmatprep.subr.mxu0 0.0
  %825 = vmatpush1.msra.mxu0 0.0
  %826 = vmatprep.subr.mxu0 0.0
  %827 = vmatpush1.msra.mxu0 0.0
  %828 = vmatprep.subr.mxu0 0.0
  %829 = vmatpush1.msra.mxu0 0.0
  %830 = vmatprep.subr.mxu0 0.0
  %831 = vmatpush1.msra.mxu0 0.0
  %832 = vmatprep.subr.mxu0 0.0
  %833 = vmatpush1.msra.mxu0 0.0
  %834 = vmatprep.subr.mxu0 0.0
  %835 = vmatpush1.msra.mxu0 0.0
  %836 = vmatprep.subr.mxu0 0.0
  %837 = vmatpush1.msra.mxu0 0.0
  %838 = vmatprep.subr.mxu0 0.0
  %839 = vmatpush1.msra.mxu0 0.0
  %840 = vmatprep.subr.mxu0 0.0
  %841 = vmatpush1.msra.mxu0 0.0
  %842 = vmatprep.subr.mxu0 0.0
  %843 = vmatpush1.msra.mxu0 0.0
  %844 = vmatprep.subr.mxu0 0.0
  %845 = vmatpush1.msra.mxu0 0.0
  %846 = vmatprep.subr.mxu0 0.0
  %847 = vmatpush1.msra.mxu0 0.0
  %848 = vmatprep.subr.mxu0 0.0
  %849 = vmatpush1.msra.mxu0 0.0
  %850 = vmatprep.subr.mxu0 0.0
  %851 = vmatpush1.msra.mxu0 0.0
  %852 = vmatprep.subr.mxu0 0.0
  %853 = vmatpush1.msra.mxu0 0.0
  %854 = vmatprep.subr.mxu0 0.0
  %855 = vmatpush1.msra.mxu0 0.0
  %856 = vmatprep.subr.mxu0 0.0
  %857 = vmatpush1.msra.mxu0 0.0
  %858 = vmatprep.subr.mxu0 0.0
  %859 = vmatpush1.msra.mxu0 0.0
  %860 = vmatprep.subr.mxu0 0.0
  %861 = vmatpush1.msra.mxu0 0.0
  %862 = vmatprep.subr.mxu0 0.0
  %863 = vmatpush1.msra.mxu0 0.0
  %864 = vmatprep.subr.mxu0 0.0
  %865 = vmatpush1.msra.mxu0 0.0
  %866 = vmatprep.subr.mxu0 0.0
  %867 = vmatpush1.msra.mxu0 0.0
  %868 = vmatprep.subr.mxu0 0.0
  %869 = vmatpush1.msra.mxu0 0.0
  %870 = vmatprep.subr.mxu0 0.0
  %871 = vmatpush1.msra.mxu0 0.0
  %872 = vmatprep.subr.mxu0 0.0
  %873 = vmatpush1.msra.mxu0 0.0
  %874 = vmatprep.subr.mxu0 0.0
  %875 = vmatpush1.msra.mxu0 0.0
  %876 = vmatprep.subr.mxu0 0.0
  %877 = vmatpush1.msra.mxu0 0.0
  %878 = vmatprep.subr.mxu0 0.0
  %879 = vmatpush1.msra.mxu0 0.0
  %880 = vmatprep.subr.mxu0 0.0
  %881 = vmatpush1.msra.mxu0 0.0
  %882 = vmatprep.mubr.f32.mxu0 0.0
  %883 = vmatmul.mubr.f32.gmra.mrb[0].mxu0 %v795
  %v884 = vpop.f32.mrb[0].mxu0
  %v885 = vadd.f32 0.0, %v884
  %v886 = vpop.f32.mrb[0].mxu0
  %887 = vmatprep.mubr.f32.mxu0 0.0
  %888 = vmatmul.mubr.f32.gmra.mrb[0].mxu0 %v798
  %v889 = vpop.f32.mrb[0].mxu0
  %v890 = vadd.f32 0.0, %v889
  %v891 = vpop.f32.mrb[0].mxu0
  %892 = vmatprep.mubr.f32.mxu0 0.0
  %893 = vmatmul.mubr.f32.gmra.mrb[0].mxu0 %v801
  %v894 = vpop.f32.mrb[0].mxu0
  %v895 = vadd.f32 0.0, %v894
  %v896 = vpop.f32.mrb[0].mxu0
  %897 = vmatprep.mubr.f32.mxu0 0.0
  %898 = vmatmul.mubr.f32.gmra.mrb[0].mxu0 %v804
  %v899 = vpop.f32.mrb[0].mxu0
  %v900 = vadd.f32 0.0, %v899
  %v901 = vpop.f32.mrb[0].mxu0
  %902 = vmatprep.mubr.f32.mxu0 0.0
  %903 = vmatmul.mubr.f32.gmra.mrb[0].mxu0 %v807
  %v904 = vpop.f32.mrb[0].mxu0
  %v905 = vadd.f32 0.0, %v904
  %v906 = vpop.f32.mrb[0].mxu0
  %907 = vmatprep.mubr.f32.mxu0 0.0
  %908 = vmatmul.mubr.f32.gmra.mrb[0].mxu0 %v810
  %v909 = vpop.f32.mrb[0].mxu0
  %v910 = vadd.f32 0.0, %v909
  %v911 = vpop.f32.mrb[0].mxu0
  %912 = vmatprep.mubr.f32.mxu0 0.0
  %913 = vmatmul.mubr.f32.gmra.mrb[0].mxu0 %v813
  %v914 = vpop.f32.mrb[0].mxu0
  %v915 = vadd.f32 0.0, %v914
  %v916 = vpop.f32.mrb[0].mxu0
  %917 = vmatprep.mubr.f32.mxu0 0.0
  %918 = vmatmul.mubr.f32.gmra.mrb[0].mxu0 %v816
  %v919 = vpop.f32.mrb[0].mxu0
  %v920 = vadd.f32 0.0, %v919
  %v921 = vpop.f32.mrb[0].mxu0
  %922 = vdwg.mxu0
  %v923 = vld [vmem:[%s5] sm:$0x1]
  %v925 = vlaneseq
  %v926 = vshrl.u32 %v925, 7
  %v927 = vsub.s32 0, %v926
  %v928 = vrot.slane %v923, %v927
  %v930 = vmul.f32 %v885, %v928
  %v931 = vmul.f32 %v890, %v928
  %v932 = vmul.f32 %v895, %v928
  %v933 = vmul.f32 %v900, %v928
  %v934 = vmul.f32 %v905, %v928
  %v935 = vmul.f32 %v910, %v928
  %v936 = vmul.f32 %v915, %v928
  %v937 = vmul.f32 %v920, %v928
  %v938 = vld [vmem:[%s6] sm:$0x1]
  %v940 = vlaneseq
  %v941 = vshrl.u32 %v940, 7
  %v942 = vsub.s32 0, %v941
  %v943 = vrot.slane %v938, %v942
  %v945 = vadd.f32 %v930, %v943
  %v946 = vadd.f32 %v931, %v943
  %v947 = vadd.f32 %v932, %v943
  %v948 = vadd.f32 %v933, %v943
  %v949 = vadd.f32 %v934, %v943
  %v950 = vadd.f32 %v935, %v943
  %v951 = vadd.f32 %v936, %v943
  %v952 = vadd.f32 %v937, %v943
  %v953 = vadd.f32 %v945, %v44
  %v954 = vadd.f32 %v946, %v45
  %v955 = vadd.f32 %v947, %v46
  %v956 = vadd.f32 %v948, %v47
  %v957 = vadd.f32 %v949, %v48
  %v958 = vadd.f32 %v950, %v49
  %v959 = vadd.f32 %v951, %v50
  %v960 = vadd.f32 %v952, %v51
  %v961 = vmul.f32 %v953, 0.5
  %v962 = vmul.f32 %v954, 0.5
  %v963 = vmul.f32 %v955, 0.5
  %v964 = vmul.f32 %v956, 0.5
  %v965 = vmul.f32 %v957, 0.5
  %v966 = vmul.f32 %v958, 0.5
  %v967 = vmul.f32 %v959, 0.5
  %v968 = vmul.f32 %v960, 0.5
  %v969 = vmul.f32 %v953, 0.70710677
  %v970 = vmul.f32 %v954, 0.70710677
  %v971 = vmul.f32 %v955, 0.70710677
  %v972 = vmul.f32 %v956, 0.70710677
  %v973 = vmul.f32 %v957, 0.70710677
  %v974 = vmul.f32 %v958, 0.70710677
  %v975 = vmul.f32 %v959, 0.70710677
  %v976 = vmul.f32 %v960, 0.70710677
  %v977 = vand.u32 2147483647, %v969
  %v978 = vand.u32 2147483647, %v970
  %v979 = vand.u32 2147483647, %v971
  %v980 = vand.u32 2147483647, %v972
  %v981 = vand.u32 2147483647, %v973
  %v982 = vand.u32 2147483647, %v974
  %v983 = vand.u32 2147483647, %v975
  %v984 = vand.u32 2147483647, %v976
  %v985 = vmul.f32 %v977, 0.3275911
  %v986 = vmul.f32 %v978, 0.3275911
  %v987 = vmul.f32 %v979, 0.3275911
  %v988 = vmul.f32 %v980, 0.3275911
  %v989 = vmul.f32 %v981, 0.3275911
  %v990 = vmul.f32 %v982, 0.3275911
  %v991 = vmul.f32 %v983, 0.3275911
  %v992 = vmul.f32 %v984, 0.3275911
  %v993 = vadd.f32 %v985, 1.0
  %v994 = vadd.f32 %v986, 1.0
  %v995 = vadd.f32 %v987, 1.0
  %v996 = vadd.f32 %v988, 1.0
  %v997 = vadd.f32 %v989, 1.0
  %v998 = vadd.f32 %v990, 1.0
  %v999 = vadd.f32 %v991, 1.0
  %v1000 = vadd.f32 %v992, 1.0
  %v1001 = vrcp.pop %v993
  %v1002 = vmul.f32 1.0, %v1001
  %v1003 = vrcp.pop %v994
  %v1004 = vmul.f32 1.0, %v1003
  %v1005 = vrcp.pop %v995
  %v1006 = vmul.f32 1.0, %v1005
  %v1007 = vrcp.pop %v996
  %v1008 = vmul.f32 1.0, %v1007
  %v1009 = vrcp.pop %v997
  %v1010 = vmul.f32 1.0, %v1009
  %v1011 = vrcp.pop %v998
  %v1012 = vmul.f32 1.0, %v1011
  %v1013 = vrcp.pop %v999
  %v1014 = vmul.f32 1.0, %v1013
  %v1015 = vrcp.pop %v1000
  %v1016 = vmul.f32 1.0, %v1015
  %v1017 = vmul.f32 %v1002, 1.0614054
  %v1018 = vmul.f32 %v1004, 1.0614054
  %v1019 = vmul.f32 %v1006, 1.0614054
  %v1020 = vmul.f32 %v1008, 1.0614054
  %v1021 = vmul.f32 %v1010, 1.0614054
  %v1022 = vmul.f32 %v1012, 1.0614054
  %v1023 = vmul.f32 %v1014, 1.0614054
  %v1024 = vmul.f32 %v1016, 1.0614054
  %v1025 = vsub.f32 %v1017, 1.4531521
  %v1026 = vsub.f32 %v1018, 1.4531521
  %v1027 = vsub.f32 %v1019, 1.4531521
  %v1028 = vsub.f32 %v1020, 1.4531521
  %v1029 = vsub.f32 %v1021, 1.4531521
  %v1030 = vsub.f32 %v1022, 1.4531521
  %v1031 = vsub.f32 %v1023, 1.4531521
  %v1032 = vsub.f32 %v1024, 1.4531521
  %v1033 = vmul.f32 %v1025, %v1002
  %v1034 = vmul.f32 %v1026, %v1004
  %v1035 = vmul.f32 %v1027, %v1006
  %v1036 = vmul.f32 %v1028, %v1008
  %v1037 = vmul.f32 %v1029, %v1010
  %v1038 = vmul.f32 %v1030, %v1012
  %v1039 = vmul.f32 %v1031, %v1014
  %v1040 = vmul.f32 %v1032, %v1016
  %v1041 = vadd.f32 %v1033, 1.4214138
  %v1042 = vadd.f32 %v1034, 1.4214138
  %v1043 = vadd.f32 %v1035, 1.4214138
  %v1044 = vadd.f32 %v1036, 1.4214138
  %v1045 = vadd.f32 %v1037, 1.4214138
  %v1046 = vadd.f32 %v1038, 1.4214138
  %v1047 = vadd.f32 %v1039, 1.4214138
  %v1048 = vadd.f32 %v1040, 1.4214138
  %v1049 = vmul.f32 %v1041, %v1002
  %v1050 = vmul.f32 %v1042, %v1004
  %v1051 = vmul.f32 %v1043, %v1006
  %v1052 = vmul.f32 %v1044, %v1008
  %v1053 = vmul.f32 %v1045, %v1010
  %v1054 = vmul.f32 %v1046, %v1012
  %v1055 = vmul.f32 %v1047, %v1014
  %v1056 = vmul.f32 %v1048, %v1016
  %v1057 = vsub.f32 %v1049, 0.28449672
  %v1058 = vsub.f32 %v1050, 0.28449672
  %v1059 = vsub.f32 %v1051, 0.28449672
  %v1060 = vsub.f32 %v1052, 0.28449672
  %v1061 = vsub.f32 %v1053, 0.28449672
  %v1062 = vsub.f32 %v1054, 0.28449672
  %v1063 = vsub.f32 %v1055, 0.28449672
  %v1064 = vsub.f32 %v1056, 0.28449672
  %v1065 = vmul.f32 %v1057, %v1002
  %v1066 = vmul.f32 %v1058, %v1004
  %v1067 = vmul.f32 %v1059, %v1006
  %v1068 = vmul.f32 %v1060, %v1008
  %v1069 = vmul.f32 %v1061, %v1010
  %v1070 = vmul.f32 %v1062, %v1012
  %v1071 = vmul.f32 %v1063, %v1014
  %v1072 = vmul.f32 %v1064, %v1016
  %v1073 = vadd.f32 %v1065, 0.2548296
  %v1074 = vadd.f32 %v1066, 0.2548296
  %v1075 = vadd.f32 %v1067, 0.2548296
  %v1076 = vadd.f32 %v1068, 0.2548296
  %v1077 = vadd.f32 %v1069, 0.2548296
  %v1078 = vadd.f32 %v1070, 0.2548296
  %v1079 = vadd.f32 %v1071, 0.2548296
  %v1080 = vadd.f32 %v1072, 0.2548296
  %v1081 = vmul.f32 %v1073, %v1002
  %v1082 = vmul.f32 %v1074, %v1004
  %v1083 = vmul.f32 %v1075, %v1006
  %v1084 = vmul.f32 %v1076, %v1008
  %v1085 = vmul.f32 %v1077, %v1010
  %v1086 = vmul.f32 %v1078, %v1012
  %v1087 = vmul.f32 %v1079, %v1014
  %v1088 = vmul.f32 %v1080, %v1016
  %v1089 = vsub.f32 0.0, %v977
  %v1090 = vsub.f32 0.0, %v978
  %v1091 = vsub.f32 0.0, %v979
  %v1092 = vsub.f32 0.0, %v980
  %v1093 = vsub.f32 0.0, %v981
  %v1094 = vsub.f32 0.0, %v982
  %v1095 = vsub.f32 0.0, %v983
  %v1096 = vsub.f32 0.0, %v984
  %v1097 = vmul.f32 %v1089, %v977
  %v1098 = vmul.f32 %v1090, %v978
  %v1099 = vmul.f32 %v1091, %v979
  %v1100 = vmul.f32 %v1092, %v980
  %v1101 = vmul.f32 %v1093, %v981
  %v1102 = vmul.f32 %v1094, %v982
  %v1103 = vmul.f32 %v1095, %v983
  %v1104 = vmul.f32 %v1096, %v984
  %v1105 = vmul.f32 %v1097, 1.442695
  %v1106 = vpow.pop %v1105
  %v1107 = vmul.f32 %v1098, 1.442695
  %v1108 = vpow.pop %v1107
  %v1109 = vmul.f32 %v1099, 1.442695
  %v1110 = vpow.pop %v1109
  %v1111 = vmul.f32 %v1100, 1.442695
  %v1112 = vpow.pop %v1111
  %v1113 = vmul.f32 %v1101, 1.442695
  %v1114 = vpow.pop %v1113
  %v1115 = vmul.f32 %v1102, 1.442695
  %v1116 = vpow.pop %v1115
  %v1117 = vmul.f32 %v1103, 1.442695
  %v1118 = vpow.pop %v1117
  %v1119 = vmul.f32 %v1104, 1.442695
  %v1120 = vpow.pop %v1119
  %v1121 = vmul.f32 %v1081, %v1106
  %v1122 = vmul.f32 %v1082, %v1108
  %v1123 = vmul.f32 %v1083, %v1110
  %v1124 = vmul.f32 %v1084, %v1112
  %v1125 = vmul.f32 %v1085, %v1114
  %v1126 = vmul.f32 %v1086, %v1116
  %v1127 = vmul.f32 %v1087, %v1118
  %v1128 = vmul.f32 %v1088, %v1120
  %v1129 = vsub.f32 1.0, %v1121
  %v1130 = vsub.f32 1.0, %v1122
  %v1131 = vsub.f32 1.0, %v1123
  %v1132 = vsub.f32 1.0, %v1124
  %v1133 = vsub.f32 1.0, %v1125
  %v1134 = vsub.f32 1.0, %v1126
  %v1135 = vsub.f32 1.0, %v1127
  %v1136 = vsub.f32 1.0, %v1128
  %vm1137 = vcmp.ge.f32.partialorder %v969, 0.0
  %vm1138 = vcmp.ge.f32.partialorder %v970, 0.0
  %vm1139 = vcmp.ge.f32.partialorder %v971, 0.0
  %vm1140 = vcmp.ge.f32.partialorder %v972, 0.0
  %vm1141 = vcmp.ge.f32.partialorder %v973, 0.0
  %vm1142 = vcmp.ge.f32.partialorder %v974, 0.0
  %vm1143 = vcmp.ge.f32.partialorder %v975, 0.0
  %vm1144 = vcmp.ge.f32.partialorder %v976, 0.0
  %v1145 = vsub.f32 0.0, %v1129
  %v1146 = vsub.f32 0.0, %v1130
  %v1147 = vsub.f32 0.0, %v1131
  %v1148 = vsub.f32 0.0, %v1132
  %v1149 = vsub.f32 0.0, %v1133
  %v1150 = vsub.f32 0.0, %v1134
  %v1151 = vsub.f32 0.0, %v1135
  %v1152 = vsub.f32 0.0, %v1136
  %v1153 = vsel %vm1137, %v1129, %v1145
  %v1154 = vsel %vm1138, %v1130, %v1146
  %v1155 = vsel %vm1139, %v1131, %v1147
  %v1156 = vsel %vm1140, %v1132, %v1148
  %v1157 = vsel %vm1141, %v1133, %v1149
  %v1158 = vsel %vm1142, %v1134, %v1150
  %v1159 = vsel %vm1143, %v1135, %v1151
  %v1160 = vsel %vm1144, %v1136, %v1152
  %v1161 = vadd.f32 %v1153, 1.0
  %v1162 = vadd.f32 %v1154, 1.0
  %v1163 = vadd.f32 %v1155, 1.0
  %v1164 = vadd.f32 %v1156, 1.0
  %v1165 = vadd.f32 %v1157, 1.0
  %v1166 = vadd.f32 %v1158, 1.0
  %v1167 = vadd.f32 %v1159, 1.0
  %v1168 = vadd.f32 %v1160, 1.0
  %v1169 = vmul.f32 %v961, %v1161
  %v1170 = vmul.f32 %v962, %v1162
  %v1171 = vmul.f32 %v963, %v1163
  %v1172 = vmul.f32 %v964, %v1164
  %v1173 = vmul.f32 %v965, %v1165
  %v1174 = vmul.f32 %v966, %v1166
  %v1175 = vmul.f32 %v967, %v1167
  %v1176 = vmul.f32 %v968, %v1168
  %v1185 = vrot.slane %v1169, 2
  %v1186 = vrot.slane %v1170, 2
  %v1187 = vsel %vm322, %v1185, %v1186
  %v1188 = vrot.slane %v1171, 2
  %v1189 = vsel %vm322, %v1186, %v1188
  %v1190 = vrot.slane %v1172, 2
  %v1191 = vsel %vm322, %v1188, %v1190
  %v1192 = vrot.slane %v1173, 2
  %v1193 = vrot.slane %v1174, 2
  %v1194 = vsel %vm322, %v1192, %v1193
  %v1195 = vrot.slane %v1175, 2
  %v1196 = vsel %vm322, %v1193, %v1195
  %v1197 = vrot.slane %v1176, 2
  %v1198 = vsel %vm322, %v1195, %v1197
  %1199 = vrot.lane.b32.xlu0 %v1185, 8
  %v1200 = vpop.permute.xlu0 %1199
  %1201 = vrot.lane.b32.xlu0 %v1187, 8
  %v1202 = vpop.permute.xlu0 %1201
  %1203 = vrot.lane.b32.xlu0 %v1189, 8
  %v1204 = vpop.permute.xlu0 %1203
  %1205 = vrot.lane.b32.xlu0 %v1191, 8
  %v1206 = vpop.permute.xlu0 %1205
  %1207 = vrot.lane.b32.xlu0 %v1190, 8
  %v1208 = vpop.permute.xlu0 %1207
  %1209 = vrot.lane.b32.xlu0 %v1192, 8
  %v1210 = vpop.permute.xlu0 %1209
  %1211 = vrot.lane.b32.xlu0 %v1194, 8
  %v1212 = vpop.permute.xlu0 %1211
  %1213 = vrot.lane.b32.xlu0 %v1196, 8
  %v1214 = vpop.permute.xlu0 %1213
  %1215 = vrot.lane.b32.xlu0 %v1198, 8
  %v1216 = vpop.permute.xlu0 %1215
  %1217 = vrot.lane.b32.xlu0 %v1197, 8
  %v1218 = vpop.permute.xlu0 %1217
  %vm1229 = vcmask 1043456
  %v1230 = vrot.slane %v1169, 4
  %v1231 = vrot.slane %v1170, 4
  %v1232 = vsel %vm1229, %v1230, %v1231
  %v1233 = vrot.slane %v1171, 4
  %v1234 = vsel %vm1229, %v1231, %v1233
  %v1235 = vrot.slane %v1172, 4
  %v1236 = vsel %vm1229, %v1233, %v1235
  %v1237 = vrot.slane 0.0, 4
  %v1238 = vsel %vm1229, %v1235, %v1237
  %v1239 = vrot.slane %v1173, 4
  %v1240 = vrot.slane %v1174, 4
  %v1241 = vsel %vm1229, %v1239, %v1240
  %v1242 = vrot.slane %v1175, 4
  %v1243 = vsel %vm1229, %v1240, %v1242
  %v1244 = vrot.slane %v1176, 4
  %v1245 = vsel %vm1229, %v1242, %v1244
  %v1246 = vsel %vm1229, %v1244, %v1237
  %1247 = vrot.lane.b32.xlu0 %v1230, 16
  %v1248 = vpop.permute.xlu0 %1247
  %1249 = vrot.lane.b32.xlu0 %v1232, 16
  %v1250 = vpop.permute.xlu0 %1249
  %1251 = vrot.lane.b32.xlu0 %v1234, 16
  %v1252 = vpop.permute.xlu0 %1251
  %1253 = vrot.lane.b32.xlu0 %v1236, 16
  %v1254 = vpop.permute.xlu0 %1253
  %1255 = vrot.lane.b32.xlu0 %v1238, 16
  %v1256 = vpop.permute.xlu0 %1255
  %1257 = vrot.lane.b32.xlu0 %v1239, 16
  %v1258 = vpop.permute.xlu0 %1257
  %1259 = vrot.lane.b32.xlu0 %v1241, 16
  %v1260 = vpop.permute.xlu0 %1259
  %1261 = vrot.lane.b32.xlu0 %v1243, 16
  %v1262 = vpop.permute.xlu0 %1261
  %1263 = vrot.lane.b32.xlu0 %v1245, 16
  %v1264 = vpop.permute.xlu0 %1263
  %1265 = vrot.lane.b32.xlu0 %v1246, 16
  %v1266 = vpop.permute.xlu0 %1265
  %v1277 = vsel %vm370, 0.0, %v1200
  %v1278 = vsel %vm370, %v1169, %v1202
  %v1279 = vsel %vm370, %v1170, %v1204
  %v1280 = vsel %vm370, %v1171, %v1206
  %v1281 = vsel %vm370, %v1172, %v1208
  %v1282 = vsel %vm370, 0.0, %v1210
  %v1283 = vsel %vm370, %v1173, %v1212
  %v1284 = vsel %vm370, %v1174, %v1214
  %v1285 = vsel %vm370, %v1175, %v1216
  %v1286 = vsel %vm370, %v1176, %v1218
  %v1287 = vsel %vm381, %v1277, %v1248
  %v1288 = vsel %vm381, %v1278, %v1250
  %v1289 = vsel %vm381, %v1279, %v1252
  %v1290 = vsel %vm381, %v1280, %v1254
  %v1291 = vsel %vm381, %v1281, %v1256
  %v1292 = vsel %vm381, %v1282, %v1258
  %v1293 = vsel %vm381, %v1283, %v1260
  %v1294 = vsel %vm381, %v1284, %v1262
  %v1295 = vsel %vm381, %v1285, %v1264
  %v1296 = vsel %vm381, %v1286, %v1266
  %vm1307 = vcmask 1041408
  %v1308 = vrot.slane %v1287, 6
  %v1309 = vrot.slane %v1288, 6
  %v1310 = vsel %vm1307, %v1308, %v1309
  %v1311 = vrot.slane %v1289, 6
  %v1312 = vsel %vm1307, %v1309, %v1311
  %v1313 = vrot.slane %v1290, 6
  %v1314 = vsel %vm1307, %v1311, %v1313
  %v1315 = vrot.slane %v1291, 6
  %v1316 = vsel %vm1307, %v1313, %v1315
  %v1317 = vrot.slane %v1292, 6
  %v1318 = vrot.slane %v1293, 6
  %v1319 = vsel %vm1307, %v1317, %v1318
  %v1320 = vrot.slane %v1294, 6
  %v1321 = vsel %vm1307, %v1318, %v1320
  %v1322 = vrot.slane %v1295, 6
  %v1323 = vsel %vm1307, %v1320, %v1322
  %v1324 = vrot.slane %v1296, 6
  %v1325 = vsel %vm1307, %v1322, %v1324
  %s1326 = scalar_lea.vmem %s1, 24
  %v1327 = vld [vmem:[%s1326] sm:$0xff]
  %v1328 = vld [vmem:[%s1326 + $0x8] sm:$0xff]
  %v1329 = vld [vmem:[%s1326 + $0x10] sm:$0xff]
  %v1330 = vsel %vm424, %v1310, 0
  %v1332 = vsel %vm424, %v1312, 0
  %v1334 = vsel %vm424, %v1314, 0
  %v1336 = vsel %vm424, %v1316, 0
  %v1338 = vsel %vm424, %v1319, 0
  %v1340 = vsel %vm424, %v1321, 0
  %v1342 = vsel %vm424, %v1323, 0
  %v1344 = vsel %vm424, %v1325, 0
  %1346 = vmatprep.subr.mxu0 0.0
  %1347 = vmatpush1.msra.mxu0 %v1327
  %1348 = vmatprep.subr.mxu0 0.0
  %1349 = vmatpush1.msra.mxu0 %v1328
  %1350 = vmatprep.subr.mxu0 0.0
  %1351 = vmatpush1.msra.mxu0 %v1329
  %1352 = vmatprep.subr.mxu0 0.0
  %1353 = vmatpush1.msra.mxu0 0.0
  %1354 = vmatprep.subr.mxu0 0.0
  %1355 = vmatpush1.msra.mxu0 0.0
  %1356 = vmatprep.subr.mxu0 0.0
  %1357 = vmatpush1.msra.mxu0 0.0
  %1358 = vmatprep.subr.mxu0 0.0
  %1359 = vmatpush1.msra.mxu0 0.0
  %1360 = vmatprep.subr.mxu0 0.0
  %1361 = vmatpush1.msra.mxu0 0.0
  %1362 = vmatprep.subr.mxu0 0.0
  %1363 = vmatpush1.msra.mxu0 0.0
  %1364 = vmatprep.subr.mxu0 0.0
  %1365 = vmatpush1.msra.mxu0 0.0
  %1366 = vmatprep.subr.mxu0 0.0
  %1367 = vmatpush1.msra.mxu0 0.0
  %1368 = vmatprep.subr.mxu0 0.0
  %1369 = vmatpush1.msra.mxu0 0.0
  %1370 = vmatprep.subr.mxu0 0.0
  %1371 = vmatpush1.msra.mxu0 0.0
  %1372 = vmatprep.subr.mxu0 0.0
  %1373 = vmatpush1.msra.mxu0 0.0
  %1374 = vmatprep.subr.mxu0 0.0
  %1375 = vmatpush1.msra.mxu0 0.0
  %1376 = vmatprep.subr.mxu0 0.0
  %1377 = vmatpush1.msra.mxu0 0.0
  %1378 = vmatprep.subr.mxu0 0.0
  %1379 = vmatpush1.msra.mxu0 0.0
  %1380 = vmatprep.subr.mxu0 0.0
  %1381 = vmatpush1.msra.mxu0 0.0
  %1382 = vmatprep.subr.mxu0 0.0
  %1383 = vmatpush1.msra.mxu0 0.0
  %1384 = vmatprep.subr.mxu0 0.0
  %1385 = vmatpush1.msra.mxu0 0.0
  %1386 = vmatprep.subr.mxu0 0.0
  %1387 = vmatpush1.msra.mxu0 0.0
  %1388 = vmatprep.subr.mxu0 0.0
  %1389 = vmatpush1.msra.mxu0 0.0
  %1390 = vmatprep.subr.mxu0 0.0
  %1391 = vmatpush1.msra.mxu0 0.0
  %1392 = vmatprep.subr.mxu0 0.0
  %1393 = vmatpush1.msra.mxu0 0.0
  %1394 = vmatprep.subr.mxu0 0.0
  %1395 = vmatpush1.msra.mxu0 0.0
  %1396 = vmatprep.subr.mxu0 0.0
  %1397 = vmatpush1.msra.mxu0 0.0
  %1398 = vmatprep.subr.mxu0 0.0
  %1399 = vmatpush1.msra.mxu0 0.0
  %1400 = vmatprep.subr.mxu0 0.0
  %1401 = vmatpush1.msra.mxu0 0.0
  %1402 = vmatprep.subr.mxu0 0.0
  %1403 = vmatpush1.msra.mxu0 0.0
  %1404 = vmatprep.subr.mxu0 0.0
  %1405 = vmatpush1.msra.mxu0 0.0
  %1406 = vmatprep.subr.mxu0 0.0
  %1407 = vmatpush1.msra.mxu0 0.0
  %1408 = vmatprep.subr.mxu0 0.0
  %1409 = vmatpush1.msra.mxu0 0.0
  %1410 = vmatprep.mubr.f32.mxu0 0.0
  %1411 = vmatmul.mubr.f32.gmra.mrb[0].mxu0 %v1330
  %v1412 = vpop.f32.mrb[0].mxu0
  %v1413 = vadd.f32 0.0, %v1412
  %v1414 = vpop.f32.mrb[0].mxu0
  %1415 = vmatprep.mubr.f32.mxu0 0.0
  %1416 = vmatmul.mubr.f32.gmra.mrb[0].mxu0 %v1332
  %v1417 = vpop.f32.mrb[0].mxu0
  %v1418 = vadd.f32 0.0, %v1417
  %v1419 = vpop.f32.mrb[0].mxu0
  %1420 = vmatprep.mubr.f32.mxu0 0.0
  %1421 = vmatmul.mubr.f32.gmra.mrb[0].mxu0 %v1334
  %v1422 = vpop.f32.mrb[0].mxu0
  %v1423 = vadd.f32 0.0, %v1422
  %v1424 = vpop.f32.mrb[0].mxu0
  %1425 = vmatprep.mubr.f32.mxu0 0.0
  %1426 = vmatmul.mubr.f32.gmra.mrb[0].mxu0 %v1336
  %v1427 = vpop.f32.mrb[0].mxu0
  %v1428 = vadd.f32 0.0, %v1427
  %v1429 = vpop.f32.mrb[0].mxu0
  %1430 = vmatprep.mubr.f32.mxu0 0.0
  %1431 = vmatmul.mubr.f32.gmra.mrb[0].mxu0 %v1338
  %v1432 = vpop.f32.mrb[0].mxu0
  %v1433 = vadd.f32 0.0, %v1432
  %v1434 = vpop.f32.mrb[0].mxu0
  %1435 = vmatprep.mubr.f32.mxu0 0.0
  %1436 = vmatmul.mubr.f32.gmra.mrb[0].mxu0 %v1340
  %v1437 = vpop.f32.mrb[0].mxu0
  %v1438 = vadd.f32 0.0, %v1437
  %v1439 = vpop.f32.mrb[0].mxu0
  %1440 = vmatprep.mubr.f32.mxu0 0.0
  %1441 = vmatmul.mubr.f32.gmra.mrb[0].mxu0 %v1342
  %v1442 = vpop.f32.mrb[0].mxu0
  %v1443 = vadd.f32 0.0, %v1442
  %v1444 = vpop.f32.mrb[0].mxu0
  %1445 = vmatprep.mubr.f32.mxu0 0.0
  %1446 = vmatmul.mubr.f32.gmra.mrb[0].mxu0 %v1344
  %v1447 = vpop.f32.mrb[0].mxu0
  %v1448 = vadd.f32 0.0, %v1447
  %v1449 = vpop.f32.mrb[0].mxu0
  %1450 = vdwg.mxu0
  %s1451 = scalar_lea.vmem %s2, 1
  %v1452 = vld [vmem:[%s1451] sm:$0x1]
  %v1454 = vlaneseq
  %v1455 = vshrl.u32 %v1454, 7
  %v1456 = vsub.s32 0, %v1455
  %v1457 = vrot.slane %v1452, %v1456
  %v1459 = vmul.f32 %v1413, %v1457
  %v1460 = vmul.f32 %v1418, %v1457
  %v1461 = vmul.f32 %v1423, %v1457
  %v1462 = vmul.f32 %v1428, %v1457
  %v1463 = vmul.f32 %v1433, %v1457
  %v1464 = vmul.f32 %v1438, %v1457
  %v1465 = vmul.f32 %v1443, %v1457
  %v1466 = vmul.f32 %v1448, %v1457
  %s1467 = scalar_lea.vmem %s3, 1
  %v1468 = vld [vmem:[%s1467] sm:$0x1]
  %v1470 = vlaneseq
  %v1471 = vshrl.u32 %v1470, 7
  %v1472 = vsub.s32 0, %v1471
  %v1473 = vrot.slane %v1468, %v1472
  %v1475 = vadd.f32 %v1459, %v1473
  %v1476 = vadd.f32 %v1460, %v1473
  %v1477 = vadd.f32 %v1461, %v1473
  %v1478 = vadd.f32 %v1462, %v1473
  %v1479 = vadd.f32 %v1463, %v1473
  %v1480 = vadd.f32 %v1464, %v1473
  %v1481 = vadd.f32 %v1465, %v1473
  %v1482 = vadd.f32 %v1466, %v1473
  %v1483 = vmul.f32 %v1475, 0.5
  %v1484 = vmul.f32 %v1476, 0.5
  %v1485 = vmul.f32 %v1477, 0.5
  %v1486 = vmul.f32 %v1478, 0.5
  %v1487 = vmul.f32 %v1479, 0.5
  %v1488 = vmul.f32 %v1480, 0.5
  %v1489 = vmul.f32 %v1481, 0.5
  %v1490 = vmul.f32 %v1482, 0.5
  %v1491 = vmul.f32 %v1475, 0.70710677
  %v1492 = vmul.f32 %v1476, 0.70710677
  %v1493 = vmul.f32 %v1477, 0.70710677
  %v1494 = vmul.f32 %v1478, 0.70710677
  %v1495 = vmul.f32 %v1479, 0.70710677
  %v1496 = vmul.f32 %v1480, 0.70710677
  %v1497 = vmul.f32 %v1481, 0.70710677
  %v1498 = vmul.f32 %v1482, 0.70710677
  %v1499 = vand.u32 2147483647, %v1491
  %v1500 = vand.u32 2147483647, %v1492
  %v1501 = vand.u32 2147483647, %v1493
  %v1502 = vand.u32 2147483647, %v1494
  %v1503 = vand.u32 2147483647, %v1495
  %v1504 = vand.u32 2147483647, %v1496
  %v1505 = vand.u32 2147483647, %v1497
  %v1506 = vand.u32 2147483647, %v1498
  %v1507 = vmul.f32 %v1499, 0.3275911
  %v1508 = vmul.f32 %v1500, 0.3275911
  %v1509 = vmul.f32 %v1501, 0.3275911
  %v1510 = vmul.f32 %v1502, 0.3275911
  %v1511 = vmul.f32 %v1503, 0.3275911
  %v1512 = vmul.f32 %v1504, 0.3275911
  %v1513 = vmul.f32 %v1505, 0.3275911
  %v1514 = vmul.f32 %v1506, 0.3275911
  %v1515 = vadd.f32 %v1507, 1.0
  %v1516 = vadd.f32 %v1508, 1.0
  %v1517 = vadd.f32 %v1509, 1.0
  %v1518 = vadd.f32 %v1510, 1.0
  %v1519 = vadd.f32 %v1511, 1.0
  %v1520 = vadd.f32 %v1512, 1.0
  %v1521 = vadd.f32 %v1513, 1.0
  %v1522 = vadd.f32 %v1514, 1.0
  %v1523 = vrcp.pop %v1515
  %v1524 = vmul.f32 1.0, %v1523
  %v1525 = vrcp.pop %v1516
  %v1526 = vmul.f32 1.0, %v1525
  %v1527 = vrcp.pop %v1517
  %v1528 = vmul.f32 1.0, %v1527
  %v1529 = vrcp.pop %v1518
  %v1530 = vmul.f32 1.0, %v1529
  %v1531 = vrcp.pop %v1519
  %v1532 = vmul.f32 1.0, %v1531
  %v1533 = vrcp.pop %v1520
  %v1534 = vmul.f32 1.0, %v1533
  %v1535 = vrcp.pop %v1521
  %v1536 = vmul.f32 1.0, %v1535
  %v1537 = vrcp.pop %v1522
  %v1538 = vmul.f32 1.0, %v1537
  %v1539 = vmul.f32 %v1524, 1.0614054
  %v1540 = vmul.f32 %v1526, 1.0614054
  %v1541 = vmul.f32 %v1528, 1.0614054
  %v1542 = vmul.f32 %v1530, 1.0614054
  %v1543 = vmul.f32 %v1532, 1.0614054
  %v1544 = vmul.f32 %v1534, 1.0614054
  %v1545 = vmul.f32 %v1536, 1.0614054
  %v1546 = vmul.f32 %v1538, 1.0614054
  %v1547 = vsub.f32 %v1539, 1.4531521
  %v1548 = vsub.f32 %v1540, 1.4531521
  %v1549 = vsub.f32 %v1541, 1.4531521
  %v1550 = vsub.f32 %v1542, 1.4531521
  %v1551 = vsub.f32 %v1543, 1.4531521
  %v1552 = vsub.f32 %v1544, 1.4531521
  %v1553 = vsub.f32 %v1545, 1.4531521
  %v1554 = vsub.f32 %v1546, 1.4531521
  %v1555 = vmul.f32 %v1547, %v1524
  %v1556 = vmul.f32 %v1548, %v1526
  %v1557 = vmul.f32 %v1549, %v1528
  %v1558 = vmul.f32 %v1550, %v1530
  %v1559 = vmul.f32 %v1551, %v1532
  %v1560 = vmul.f32 %v1552, %v1534
  %v1561 = vmul.f32 %v1553, %v1536
  %v1562 = vmul.f32 %v1554, %v1538
  %v1563 = vadd.f32 %v1555, 1.4214138
  %v1564 = vadd.f32 %v1556, 1.4214138
  %v1565 = vadd.f32 %v1557, 1.4214138
  %v1566 = vadd.f32 %v1558, 1.4214138
  %v1567 = vadd.f32 %v1559, 1.4214138
  %v1568 = vadd.f32 %v1560, 1.4214138
  %v1569 = vadd.f32 %v1561, 1.4214138
  %v1570 = vadd.f32 %v1562, 1.4214138
  %v1571 = vmul.f32 %v1563, %v1524
  %v1572 = vmul.f32 %v1564, %v1526
  %v1573 = vmul.f32 %v1565, %v1528
  %v1574 = vmul.f32 %v1566, %v1530
  %v1575 = vmul.f32 %v1567, %v1532
  %v1576 = vmul.f32 %v1568, %v1534
  %v1577 = vmul.f32 %v1569, %v1536
  %v1578 = vmul.f32 %v1570, %v1538
  %v1579 = vsub.f32 %v1571, 0.28449672
  %v1580 = vsub.f32 %v1572, 0.28449672
  %v1581 = vsub.f32 %v1573, 0.28449672
  %v1582 = vsub.f32 %v1574, 0.28449672
  %v1583 = vsub.f32 %v1575, 0.28449672
  %v1584 = vsub.f32 %v1576, 0.28449672
  %v1585 = vsub.f32 %v1577, 0.28449672
  %v1586 = vsub.f32 %v1578, 0.28449672
  %v1587 = vmul.f32 %v1579, %v1524
  %v1588 = vmul.f32 %v1580, %v1526
  %v1589 = vmul.f32 %v1581, %v1528
  %v1590 = vmul.f32 %v1582, %v1530
  %v1591 = vmul.f32 %v1583, %v1532
  %v1592 = vmul.f32 %v1584, %v1534
  %v1593 = vmul.f32 %v1585, %v1536
  %v1594 = vmul.f32 %v1586, %v1538
  %v1595 = vadd.f32 %v1587, 0.2548296
  %v1596 = vadd.f32 %v1588, 0.2548296
  %v1597 = vadd.f32 %v1589, 0.2548296
  %v1598 = vadd.f32 %v1590, 0.2548296
  %v1599 = vadd.f32 %v1591, 0.2548296
  %v1600 = vadd.f32 %v1592, 0.2548296
  %v1601 = vadd.f32 %v1593, 0.2548296
  %v1602 = vadd.f32 %v1594, 0.2548296
  %v1603 = vmul.f32 %v1595, %v1524
  %v1604 = vmul.f32 %v1596, %v1526
  %v1605 = vmul.f32 %v1597, %v1528
  %v1606 = vmul.f32 %v1598, %v1530
  %v1607 = vmul.f32 %v1599, %v1532
  %v1608 = vmul.f32 %v1600, %v1534
  %v1609 = vmul.f32 %v1601, %v1536
  %v1610 = vmul.f32 %v1602, %v1538
  %v1611 = vsub.f32 0.0, %v1499
  %v1612 = vsub.f32 0.0, %v1500
  %v1613 = vsub.f32 0.0, %v1501
  %v1614 = vsub.f32 0.0, %v1502
  %v1615 = vsub.f32 0.0, %v1503
  %v1616 = vsub.f32 0.0, %v1504
  %v1617 = vsub.f32 0.0, %v1505
  %v1618 = vsub.f32 0.0, %v1506
  %v1619 = vmul.f32 %v1611, %v1499
  %v1620 = vmul.f32 %v1612, %v1500
  %v1621 = vmul.f32 %v1613, %v1501
  %v1622 = vmul.f32 %v1614, %v1502
  %v1623 = vmul.f32 %v1615, %v1503
  %v1624 = vmul.f32 %v1616, %v1504
  %v1625 = vmul.f32 %v1617, %v1505
  %v1626 = vmul.f32 %v1618, %v1506
  %v1627 = vmul.f32 %v1619, 1.442695
  %v1628 = vpow.pop %v1627
  %v1629 = vmul.f32 %v1620, 1.442695
  %v1630 = vpow.pop %v1629
  %v1631 = vmul.f32 %v1621, 1.442695
  %v1632 = vpow.pop %v1631
  %v1633 = vmul.f32 %v1622, 1.442695
  %v1634 = vpow.pop %v1633
  %v1635 = vmul.f32 %v1623, 1.442695
  %v1636 = vpow.pop %v1635
  %v1637 = vmul.f32 %v1624, 1.442695
  %v1638 = vpow.pop %v1637
  %v1639 = vmul.f32 %v1625, 1.442695
  %v1640 = vpow.pop %v1639
  %v1641 = vmul.f32 %v1626, 1.442695
  %v1642 = vpow.pop %v1641
  %v1643 = vmul.f32 %v1603, %v1628
  %v1644 = vmul.f32 %v1604, %v1630
  %v1645 = vmul.f32 %v1605, %v1632
  %v1646 = vmul.f32 %v1606, %v1634
  %v1647 = vmul.f32 %v1607, %v1636
  %v1648 = vmul.f32 %v1608, %v1638
  %v1649 = vmul.f32 %v1609, %v1640
  %v1650 = vmul.f32 %v1610, %v1642
  %v1651 = vsub.f32 1.0, %v1643
  %v1652 = vsub.f32 1.0, %v1644
  %v1653 = vsub.f32 1.0, %v1645
  %v1654 = vsub.f32 1.0, %v1646
  %v1655 = vsub.f32 1.0, %v1647
  %v1656 = vsub.f32 1.0, %v1648
  %v1657 = vsub.f32 1.0, %v1649
  %v1658 = vsub.f32 1.0, %v1650
  %vm1659 = vcmp.ge.f32.partialorder %v1491, 0.0
  %vm1660 = vcmp.ge.f32.partialorder %v1492, 0.0
  %vm1661 = vcmp.ge.f32.partialorder %v1493, 0.0
  %vm1662 = vcmp.ge.f32.partialorder %v1494, 0.0
  %vm1663 = vcmp.ge.f32.partialorder %v1495, 0.0
  %vm1664 = vcmp.ge.f32.partialorder %v1496, 0.0
  %vm1665 = vcmp.ge.f32.partialorder %v1497, 0.0
  %vm1666 = vcmp.ge.f32.partialorder %v1498, 0.0
  %v1667 = vsub.f32 0.0, %v1651
  %v1668 = vsub.f32 0.0, %v1652
  %v1669 = vsub.f32 0.0, %v1653
  %v1670 = vsub.f32 0.0, %v1654
  %v1671 = vsub.f32 0.0, %v1655
  %v1672 = vsub.f32 0.0, %v1656
  %v1673 = vsub.f32 0.0, %v1657
  %v1674 = vsub.f32 0.0, %v1658
  %v1675 = vsel %vm1659, %v1651, %v1667
  %v1676 = vsel %vm1660, %v1652, %v1668
  %v1677 = vsel %vm1661, %v1653, %v1669
  %v1678 = vsel %vm1662, %v1654, %v1670
  %v1679 = vsel %vm1663, %v1655, %v1671
  %v1680 = vsel %vm1664, %v1656, %v1672
  %v1681 = vsel %vm1665, %v1657, %v1673
  %v1682 = vsel %vm1666, %v1658, %v1674
  %v1683 = vadd.f32 %v1675, 1.0
  %v1684 = vadd.f32 %v1676, 1.0
  %v1685 = vadd.f32 %v1677, 1.0
  %v1686 = vadd.f32 %v1678, 1.0
  %v1687 = vadd.f32 %v1679, 1.0
  %v1688 = vadd.f32 %v1680, 1.0
  %v1689 = vadd.f32 %v1681, 1.0
  %v1690 = vadd.f32 %v1682, 1.0
  %v1691 = vmul.f32 %v1483, %v1683
  %v1692 = vmul.f32 %v1484, %v1684
  %v1693 = vmul.f32 %v1485, %v1685
  %v1694 = vmul.f32 %v1486, %v1686
  %v1695 = vmul.f32 %v1487, %v1687
  %v1696 = vmul.f32 %v1488, %v1688
  %v1697 = vmul.f32 %v1489, %v1689
  %v1698 = vmul.f32 %v1490, %v1690
  %s1699 = scalar_lea.vmem %s4, 16
  %v1700 = vld [vmem:[%s1699] sm:$0xff]
  %v1701 = vld [vmem:[%s1699 + $0x8] sm:$0xff]
  %v1703 = vsel %vm381, %v1691, 0
  %v1706 = vsel %vm381, %v1692, 0
  %v1709 = vsel %vm381, %v1693, 0
  %v1712 = vsel %vm381, %v1694, 0
  %v1715 = vsel %vm381, %v1695, 0
  %v1718 = vsel %vm381, %v1696, 0
  %v1721 = vsel %vm381, %v1697, 0
  %v1724 = vsel %vm381, %v1698, 0
  %1726 = vmatprep.subr.mxu0 0.0
  %1727 = vmatpush1.msra.mxu0 %v1700
  %1728 = vmatprep.subr.mxu0 0.0
  %1729 = vmatpush1.msra.mxu0 %v1701
  %1730 = vmatprep.subr.mxu0 0.0
  %1731 = vmatpush1.msra.mxu0 0.0
  %1732 = vmatprep.subr.mxu0 0.0
  %1733 = vmatpush1.msra.mxu0 0.0
  %1734 = vmatprep.subr.mxu0 0.0
  %1735 = vmatpush1.msra.mxu0 0.0
  %1736 = vmatprep.subr.mxu0 0.0
  %1737 = vmatpush1.msra.mxu0 0.0
  %1738 = vmatprep.subr.mxu0 0.0
  %1739 = vmatpush1.msra.mxu0 0.0
  %1740 = vmatprep.subr.mxu0 0.0
  %1741 = vmatpush1.msra.mxu0 0.0
  %1742 = vmatprep.subr.mxu0 0.0
  %1743 = vmatpush1.msra.mxu0 0.0
  %1744 = vmatprep.subr.mxu0 0.0
  %1745 = vmatpush1.msra.mxu0 0.0
  %1746 = vmatprep.subr.mxu0 0.0
  %1747 = vmatpush1.msra.mxu0 0.0
  %1748 = vmatprep.subr.mxu0 0.0
  %1749 = vmatpush1.msra.mxu0 0.0
  %1750 = vmatprep.subr.mxu0 0.0
  %1751 = vmatpush1.msra.mxu0 0.0
  %1752 = vmatprep.subr.mxu0 0.0
  %1753 = vmatpush1.msra.mxu0 0.0
  %1754 = vmatprep.subr.mxu0 0.0
  %1755 = vmatpush1.msra.mxu0 0.0
  %1756 = vmatprep.subr.mxu0 0.0
  %1757 = vmatpush1.msra.mxu0 0.0
  %1758 = vmatprep.subr.mxu0 0.0
  %1759 = vmatpush1.msra.mxu0 0.0
  %1760 = vmatprep.subr.mxu0 0.0
  %1761 = vmatpush1.msra.mxu0 0.0
  %1762 = vmatprep.subr.mxu0 0.0
  %1763 = vmatpush1.msra.mxu0 0.0
  %1764 = vmatprep.subr.mxu0 0.0
  %1765 = vmatpush1.msra.mxu0 0.0
  %1766 = vmatprep.subr.mxu0 0.0
  %1767 = vmatpush1.msra.mxu0 0.0
  %1768 = vmatprep.subr.mxu0 0.0
  %1769 = vmatpush1.msra.mxu0 0.0
  %1770 = vmatprep.subr.mxu0 0.0
  %1771 = vmatpush1.msra.mxu0 0.0
  %1772 = vmatprep.subr.mxu0 0.0
  %1773 = vmatpush1.msra.mxu0 0.0
  %1774 = vmatprep.subr.mxu0 0.0
  %1775 = vmatpush1.msra.mxu0 0.0
  %1776 = vmatprep.subr.mxu0 0.0
  %1777 = vmatpush1.msra.mxu0 0.0
  %1778 = vmatprep.subr.mxu0 0.0
  %1779 = vmatpush1.msra.mxu0 0.0
  %1780 = vmatprep.subr.mxu0 0.0
  %1781 = vmatpush1.msra.mxu0 0.0
  %1782 = vmatprep.subr.mxu0 0.0
  %1783 = vmatpush1.msra.mxu0 0.0
  %1784 = vmatprep.subr.mxu0 0.0
  %1785 = vmatpush1.msra.mxu0 0.0
  %1786 = vmatprep.subr.mxu0 0.0
  %1787 = vmatpush1.msra.mxu0 0.0
  %1788 = vmatprep.subr.mxu0 0.0
  %1789 = vmatpush1.msra.mxu0 0.0
  %1790 = vmatprep.mubr.f32.mxu0 0.0
  %1791 = vmatmul.mubr.f32.gmra.mrb[0].mxu0 %v1703
  %v1792 = vpop.f32.mrb[0].mxu0
  %v1793 = vadd.f32 0.0, %v1792
  %v1794 = vpop.f32.mrb[0].mxu0
  %1795 = vmatprep.mubr.f32.mxu0 0.0
  %1796 = vmatmul.mubr.f32.gmra.mrb[0].mxu0 %v1706
  %v1797 = vpop.f32.mrb[0].mxu0
  %v1798 = vadd.f32 0.0, %v1797
  %v1799 = vpop.f32.mrb[0].mxu0
  %1800 = vmatprep.mubr.f32.mxu0 0.0
  %1801 = vmatmul.mubr.f32.gmra.mrb[0].mxu0 %v1709
  %v1802 = vpop.f32.mrb[0].mxu0
  %v1803 = vadd.f32 0.0, %v1802
  %v1804 = vpop.f32.mrb[0].mxu0
  %1805 = vmatprep.mubr.f32.mxu0 0.0
  %1806 = vmatmul.mubr.f32.gmra.mrb[0].mxu0 %v1712
  %v1807 = vpop.f32.mrb[0].mxu0
  %v1808 = vadd.f32 0.0, %v1807
  %v1809 = vpop.f32.mrb[0].mxu0
  %1810 = vmatprep.mubr.f32.mxu0 0.0
  %1811 = vmatmul.mubr.f32.gmra.mrb[0].mxu0 %v1715
  %v1812 = vpop.f32.mrb[0].mxu0
  %v1813 = vadd.f32 0.0, %v1812
  %v1814 = vpop.f32.mrb[0].mxu0
  %1815 = vmatprep.mubr.f32.mxu0 0.0
  %1816 = vmatmul.mubr.f32.gmra.mrb[0].mxu0 %v1718
  %v1817 = vpop.f32.mrb[0].mxu0
  %v1818 = vadd.f32 0.0, %v1817
  %v1819 = vpop.f32.mrb[0].mxu0
  %1820 = vmatprep.mubr.f32.mxu0 0.0
  %1821 = vmatmul.mubr.f32.gmra.mrb[0].mxu0 %v1721
  %v1822 = vpop.f32.mrb[0].mxu0
  %v1823 = vadd.f32 0.0, %v1822
  %v1824 = vpop.f32.mrb[0].mxu0
  %1825 = vmatprep.mubr.f32.mxu0 0.0
  %1826 = vmatmul.mubr.f32.gmra.mrb[0].mxu0 %v1724
  %v1827 = vpop.f32.mrb[0].mxu0
  %v1828 = vadd.f32 0.0, %v1827
  %v1829 = vpop.f32.mrb[0].mxu0
  %1830 = vdwg.mxu0
  %s1831 = scalar_lea.vmem %s5, 1
  %v1832 = vld [vmem:[%s1831] sm:$0x1]
  %v1834 = vlaneseq
  %v1835 = vshrl.u32 %v1834, 7
  %v1836 = vsub.s32 0, %v1835
  %v1837 = vrot.slane %v1832, %v1836
  %v1839 = vmul.f32 %v1793, %v1837
  %v1840 = vmul.f32 %v1798, %v1837
  %v1841 = vmul.f32 %v1803, %v1837
  %v1842 = vmul.f32 %v1808, %v1837
  %v1843 = vmul.f32 %v1813, %v1837
  %v1844 = vmul.f32 %v1818, %v1837
  %v1845 = vmul.f32 %v1823, %v1837
  %v1846 = vmul.f32 %v1828, %v1837
  %s1847 = scalar_lea.vmem %s6, 1
  %v1848 = vld [vmem:[%s1847] sm:$0x1]
  %v1850 = vlaneseq
  %v1851 = vshrl.u32 %v1850, 7
  %v1852 = vsub.s32 0, %v1851
  %v1853 = vrot.slane %v1848, %v1852
  %v1855 = vadd.f32 %v1839, %v1853
  %v1856 = vadd.f32 %v1840, %v1853
  %v1857 = vadd.f32 %v1841, %v1853
  %v1858 = vadd.f32 %v1842, %v1853
  %v1859 = vadd.f32 %v1843, %v1853
  %v1860 = vadd.f32 %v1844, %v1853
  %v1861 = vadd.f32 %v1845, %v1853
  %v1862 = vadd.f32 %v1846, %v1853
  %v1863 = vadd.f32 %v1855, %v953
  %v1864 = vadd.f32 %v1856, %v954
  %v1865 = vadd.f32 %v1857, %v955
  %v1866 = vadd.f32 %v1858, %v956
  %v1867 = vadd.f32 %v1859, %v957
  %v1868 = vadd.f32 %v1860, %v958
  %v1869 = vadd.f32 %v1861, %v959
  %v1870 = vadd.f32 %v1862, %v960
  %v1871 = vmul.f32 %v1863, 0.5
  %v1872 = vmul.f32 %v1864, 0.5
  %v1873 = vmul.f32 %v1865, 0.5
  %v1874 = vmul.f32 %v1866, 0.5
  %v1875 = vmul.f32 %v1867, 0.5
  %v1876 = vmul.f32 %v1868, 0.5
  %v1877 = vmul.f32 %v1869, 0.5
  %v1878 = vmul.f32 %v1870, 0.5
  %v1879 = vmul.f32 %v1863, 0.70710677
  %v1880 = vmul.f32 %v1864, 0.70710677
  %v1881 = vmul.f32 %v1865, 0.70710677
  %v1882 = vmul.f32 %v1866, 0.70710677
  %v1883 = vmul.f32 %v1867, 0.70710677
  %v1884 = vmul.f32 %v1868, 0.70710677
  %v1885 = vmul.f32 %v1869, 0.70710677
  %v1886 = vmul.f32 %v1870, 0.70710677
  %v1887 = vand.u32 2147483647, %v1879
  %v1888 = vand.u32 2147483647, %v1880
  %v1889 = vand.u32 2147483647, %v1881
  %v1890 = vand.u32 2147483647, %v1882
  %v1891 = vand.u32 2147483647, %v1883
  %v1892 = vand.u32 2147483647, %v1884
  %v1893 = vand.u32 2147483647, %v1885
  %v1894 = vand.u32 2147483647, %v1886
  %v1895 = vmul.f32 %v1887, 0.3275911
  %v1896 = vmul.f32 %v1888, 0.3275911
  %v1897 = vmul.f32 %v1889, 0.3275911
  %v1898 = vmul.f32 %v1890, 0.3275911
  %v1899 = vmul.f32 %v1891, 0.3275911
  %v1900 = vmul.f32 %v1892, 0.3275911
  %v1901 = vmul.f32 %v1893, 0.3275911
  %v1902 = vmul.f32 %v1894, 0.3275911
  %v1903 = vadd.f32 %v1895, 1.0
  %v1904 = vadd.f32 %v1896, 1.0
  %v1905 = vadd.f32 %v1897, 1.0
  %v1906 = vadd.f32 %v1898, 1.0
  %v1907 = vadd.f32 %v1899, 1.0
  %v1908 = vadd.f32 %v1900, 1.0
  %v1909 = vadd.f32 %v1901, 1.0
  %v1910 = vadd.f32 %v1902, 1.0
  %v1911 = vrcp.pop %v1903
  %v1912 = vmul.f32 1.0, %v1911
  %v1913 = vrcp.pop %v1904
  %v1914 = vmul.f32 1.0, %v1913
  %v1915 = vrcp.pop %v1905
  %v1916 = vmul.f32 1.0, %v1915
  %v1917 = vrcp.pop %v1906
  %v1918 = vmul.f32 1.0, %v1917
  %v1919 = vrcp.pop %v1907
  %v1920 = vmul.f32 1.0, %v1919
  %v1921 = vrcp.pop %v1908
  %v1922 = vmul.f32 1.0, %v1921
  %v1923 = vrcp.pop %v1909
  %v1924 = vmul.f32 1.0, %v1923
  %v1925 = vrcp.pop %v1910
  %v1926 = vmul.f32 1.0, %v1925
  %v1927 = vmul.f32 %v1912, 1.0614054
  %v1928 = vmul.f32 %v1914, 1.0614054
  %v1929 = vmul.f32 %v1916, 1.0614054
  %v1930 = vmul.f32 %v1918, 1.0614054
  %v1931 = vmul.f32 %v1920, 1.0614054
  %v1932 = vmul.f32 %v1922, 1.0614054
  %v1933 = vmul.f32 %v1924, 1.0614054
  %v1934 = vmul.f32 %v1926, 1.0614054
  %v1935 = vsub.f32 %v1927, 1.4531521
  %v1936 = vsub.f32 %v1928, 1.4531521
  %v1937 = vsub.f32 %v1929, 1.4531521
  %v1938 = vsub.f32 %v1930, 1.4531521
  %v1939 = vsub.f32 %v1931, 1.4531521
  %v1940 = vsub.f32 %v1932, 1.4531521
  %v1941 = vsub.f32 %v1933, 1.4531521
  %v1942 = vsub.f32 %v1934, 1.4531521
  %v1943 = vmul.f32 %v1935, %v1912
  %v1944 = vmul.f32 %v1936, %v1914
  %v1945 = vmul.f32 %v1937, %v1916
  %v1946 = vmul.f32 %v1938, %v1918
  %v1947 = vmul.f32 %v1939, %v1920
  %v1948 = vmul.f32 %v1940, %v1922
  %v1949 = vmul.f32 %v1941, %v1924
  %v1950 = vmul.f32 %v1942, %v1926
  %v1951 = vadd.f32 %v1943, 1.4214138
  %v1952 = vadd.f32 %v1944, 1.4214138
  %v1953 = vadd.f32 %v1945, 1.4214138
  %v1954 = vadd.f32 %v1946, 1.4214138
  %v1955 = vadd.f32 %v1947, 1.4214138
  %v1956 = vadd.f32 %v1948, 1.4214138
  %v1957 = vadd.f32 %v1949, 1.4214138
  %v1958 = vadd.f32 %v1950, 1.4214138
  %v1959 = vmul.f32 %v1951, %v1912
  %v1960 = vmul.f32 %v1952, %v1914
  %v1961 = vmul.f32 %v1953, %v1916
  %v1962 = vmul.f32 %v1954, %v1918
  %v1963 = vmul.f32 %v1955, %v1920
  %v1964 = vmul.f32 %v1956, %v1922
  %v1965 = vmul.f32 %v1957, %v1924
  %v1966 = vmul.f32 %v1958, %v1926
  %v1967 = vsub.f32 %v1959, 0.28449672
  %v1968 = vsub.f32 %v1960, 0.28449672
  %v1969 = vsub.f32 %v1961, 0.28449672
  %v1970 = vsub.f32 %v1962, 0.28449672
  %v1971 = vsub.f32 %v1963, 0.28449672
  %v1972 = vsub.f32 %v1964, 0.28449672
  %v1973 = vsub.f32 %v1965, 0.28449672
  %v1974 = vsub.f32 %v1966, 0.28449672
  %v1975 = vmul.f32 %v1967, %v1912
  %v1976 = vmul.f32 %v1968, %v1914
  %v1977 = vmul.f32 %v1969, %v1916
  %v1978 = vmul.f32 %v1970, %v1918
  %v1979 = vmul.f32 %v1971, %v1920
  %v1980 = vmul.f32 %v1972, %v1922
  %v1981 = vmul.f32 %v1973, %v1924
  %v1982 = vmul.f32 %v1974, %v1926
  %v1983 = vadd.f32 %v1975, 0.2548296
  %v1984 = vadd.f32 %v1976, 0.2548296
  %v1985 = vadd.f32 %v1977, 0.2548296
  %v1986 = vadd.f32 %v1978, 0.2548296
  %v1987 = vadd.f32 %v1979, 0.2548296
  %v1988 = vadd.f32 %v1980, 0.2548296
  %v1989 = vadd.f32 %v1981, 0.2548296
  %v1990 = vadd.f32 %v1982, 0.2548296
  %v1991 = vmul.f32 %v1983, %v1912
  %v1992 = vmul.f32 %v1984, %v1914
  %v1993 = vmul.f32 %v1985, %v1916
  %v1994 = vmul.f32 %v1986, %v1918
  %v1995 = vmul.f32 %v1987, %v1920
  %v1996 = vmul.f32 %v1988, %v1922
  %v1997 = vmul.f32 %v1989, %v1924
  %v1998 = vmul.f32 %v1990, %v1926
  %v1999 = vsub.f32 0.0, %v1887
  %v2000 = vsub.f32 0.0, %v1888
  %v2001 = vsub.f32 0.0, %v1889
  %v2002 = vsub.f32 0.0, %v1890
  %v2003 = vsub.f32 0.0, %v1891
  %v2004 = vsub.f32 0.0, %v1892
  %v2005 = vsub.f32 0.0, %v1893
  %v2006 = vsub.f32 0.0, %v1894
  %v2007 = vmul.f32 %v1999, %v1887
  %v2008 = vmul.f32 %v2000, %v1888
  %v2009 = vmul.f32 %v2001, %v1889
  %v2010 = vmul.f32 %v2002, %v1890
  %v2011 = vmul.f32 %v2003, %v1891
  %v2012 = vmul.f32 %v2004, %v1892
  %v2013 = vmul.f32 %v2005, %v1893
  %v2014 = vmul.f32 %v2006, %v1894
  %v2015 = vmul.f32 %v2007, 1.442695
  %v2016 = vpow.pop %v2015
  %v2017 = vmul.f32 %v2008, 1.442695
  %v2018 = vpow.pop %v2017
  %v2019 = vmul.f32 %v2009, 1.442695
  %v2020 = vpow.pop %v2019
  %v2021 = vmul.f32 %v2010, 1.442695
  %v2022 = vpow.pop %v2021
  %v2023 = vmul.f32 %v2011, 1.442695
  %v2024 = vpow.pop %v2023
  %v2025 = vmul.f32 %v2012, 1.442695
  %v2026 = vpow.pop %v2025
  %v2027 = vmul.f32 %v2013, 1.442695
  %v2028 = vpow.pop %v2027
  %v2029 = vmul.f32 %v2014, 1.442695
  %v2030 = vpow.pop %v2029
  %v2031 = vmul.f32 %v1991, %v2016
  %v2032 = vmul.f32 %v1992, %v2018
  %v2033 = vmul.f32 %v1993, %v2020
  %v2034 = vmul.f32 %v1994, %v2022
  %v2035 = vmul.f32 %v1995, %v2024
  %v2036 = vmul.f32 %v1996, %v2026
  %v2037 = vmul.f32 %v1997, %v2028
  %v2038 = vmul.f32 %v1998, %v2030
  %v2039 = vsub.f32 1.0, %v2031
  %v2040 = vsub.f32 1.0, %v2032
  %v2041 = vsub.f32 1.0, %v2033
  %v2042 = vsub.f32 1.0, %v2034
  %v2043 = vsub.f32 1.0, %v2035
  %v2044 = vsub.f32 1.0, %v2036
  %v2045 = vsub.f32 1.0, %v2037
  %v2046 = vsub.f32 1.0, %v2038
  %vm2047 = vcmp.ge.f32.partialorder %v1879, 0.0
  %vm2048 = vcmp.ge.f32.partialorder %v1880, 0.0
  %vm2049 = vcmp.ge.f32.partialorder %v1881, 0.0
  %vm2050 = vcmp.ge.f32.partialorder %v1882, 0.0
  %vm2051 = vcmp.ge.f32.partialorder %v1883, 0.0
  %vm2052 = vcmp.ge.f32.partialorder %v1884, 0.0
  %vm2053 = vcmp.ge.f32.partialorder %v1885, 0.0
  %vm2054 = vcmp.ge.f32.partialorder %v1886, 0.0
  %v2055 = vsub.f32 0.0, %v2039
  %v2056 = vsub.f32 0.0, %v2040
  %v2057 = vsub.f32 0.0, %v2041
  %v2058 = vsub.f32 0.0, %v2042
  %v2059 = vsub.f32 0.0, %v2043
  %v2060 = vsub.f32 0.0, %v2044
  %v2061 = vsub.f32 0.0, %v2045
  %v2062 = vsub.f32 0.0, %v2046
  %v2063 = vsel %vm2047, %v2039, %v2055
  %v2064 = vsel %vm2048, %v2040, %v2056
  %v2065 = vsel %vm2049, %v2041, %v2057
  %v2066 = vsel %vm2050, %v2042, %v2058
  %v2067 = vsel %vm2051, %v2043, %v2059
  %v2068 = vsel %vm2052, %v2044, %v2060
  %v2069 = vsel %vm2053, %v2045, %v2061
  %v2070 = vsel %vm2054, %v2046, %v2062
  %v2071 = vadd.f32 %v2063, 1.0
  %v2072 = vadd.f32 %v2064, 1.0
  %v2073 = vadd.f32 %v2065, 1.0
  %v2074 = vadd.f32 %v2066, 1.0
  %v2075 = vadd.f32 %v2067, 1.0
  %v2076 = vadd.f32 %v2068, 1.0
  %v2077 = vadd.f32 %v2069, 1.0
  %v2078 = vadd.f32 %v2070, 1.0
  %v2079 = vmul.f32 %v1871, %v2071
  %v2080 = vmul.f32 %v1872, %v2072
  %v2081 = vmul.f32 %v1873, %v2073
  %v2082 = vmul.f32 %v1874, %v2074
  %v2083 = vmul.f32 %v1875, %v2075
  %v2084 = vmul.f32 %v1876, %v2076
  %v2085 = vmul.f32 %v1877, %v2077
  %v2086 = vmul.f32 %v1878, %v2078
  %v2087 = vld [vmem:[%s7] sm:$0xff]
  %v2089 = vsel %vm370, %v2079, 0
  %v2092 = vsel %vm370, %v2080, 0
  %v2095 = vsel %vm370, %v2081, 0
  %v2098 = vsel %vm370, %v2082, 0
  %v2101 = vsel %vm370, %v2083, 0
  %v2104 = vsel %vm370, %v2084, 0
  %v2107 = vsel %vm370, %v2085, 0
  %v2110 = vsel %vm370, %v2086, 0
  %2112 = vmatprep.subr.mxu0 0.0
  %2113 = vmatpush1.msra.mxu0 %v2087
  %2114 = vmatprep.subr.mxu0 0.0
  %2115 = vmatpush1.msra.mxu0 0.0
  %2116 = vmatprep.subr.mxu0 0.0
  %2117 = vmatpush1.msra.mxu0 0.0
  %2118 = vmatprep.subr.mxu0 0.0
  %2119 = vmatpush1.msra.mxu0 0.0
  %2120 = vmatprep.subr.mxu0 0.0
  %2121 = vmatpush1.msra.mxu0 0.0
  %2122 = vmatprep.subr.mxu0 0.0
  %2123 = vmatpush1.msra.mxu0 0.0
  %2124 = vmatprep.subr.mxu0 0.0
  %2125 = vmatpush1.msra.mxu0 0.0
  %2126 = vmatprep.subr.mxu0 0.0
  %2127 = vmatpush1.msra.mxu0 0.0
  %2128 = vmatprep.subr.mxu0 0.0
  %2129 = vmatpush1.msra.mxu0 0.0
  %2130 = vmatprep.subr.mxu0 0.0
  %2131 = vmatpush1.msra.mxu0 0.0
  %2132 = vmatprep.subr.mxu0 0.0
  %2133 = vmatpush1.msra.mxu0 0.0
  %2134 = vmatprep.subr.mxu0 0.0
  %2135 = vmatpush1.msra.mxu0 0.0
  %2136 = vmatprep.subr.mxu0 0.0
  %2137 = vmatpush1.msra.mxu0 0.0
  %2138 = vmatprep.subr.mxu0 0.0
  %2139 = vmatpush1.msra.mxu0 0.0
  %2140 = vmatprep.subr.mxu0 0.0
  %2141 = vmatpush1.msra.mxu0 0.0
  %2142 = vmatprep.subr.mxu0 0.0
  %2143 = vmatpush1.msra.mxu0 0.0
  %2144 = vmatprep.subr.mxu0 0.0
  %2145 = vmatpush1.msra.mxu0 0.0
  %2146 = vmatprep.subr.mxu0 0.0
  %2147 = vmatpush1.msra.mxu0 0.0
  %2148 = vmatprep.subr.mxu0 0.0
  %2149 = vmatpush1.msra.mxu0 0.0
  %2150 = vmatprep.subr.mxu0 0.0
  %2151 = vmatpush1.msra.mxu0 0.0
  %2152 = vmatprep.subr.mxu0 0.0
  %2153 = vmatpush1.msra.mxu0 0.0
  %2154 = vmatprep.subr.mxu0 0.0
  %2155 = vmatpush1.msra.mxu0 0.0
  %2156 = vmatprep.subr.mxu0 0.0
  %2157 = vmatpush1.msra.mxu0 0.0
  %2158 = vmatprep.subr.mxu0 0.0
  %2159 = vmatpush1.msra.mxu0 0.0
  %2160 = vmatprep.subr.mxu0 0.0
  %2161 = vmatpush1.msra.mxu0 0.0
  %2162 = vmatprep.subr.mxu0 0.0
  %2163 = vmatpush1.msra.mxu0 0.0
  %2164 = vmatprep.subr.mxu0 0.0
  %2165 = vmatpush1.msra.mxu0 0.0
  %2166 = vmatprep.subr.mxu0 0.0
  %2167 = vmatpush1.msra.mxu0 0.0
  %2168 = vmatprep.subr.mxu0 0.0
  %2169 = vmatpush1.msra.mxu0 0.0
  %2170 = vmatprep.subr.mxu0 0.0
  %2171 = vmatpush1.msra.mxu0 0.0
  %2172 = vmatprep.subr.mxu0 0.0
  %2173 = vmatpush1.msra.mxu0 0.0
  %2174 = vmatprep.subr.mxu0 0.0
  %2175 = vmatpush1.msra.mxu0 0.0
  %2176 = vmatprep.mubr.f32.mxu0 0.0
  %2177 = vmatmul.mubr.f32.gmra.mrb[0].mxu0 %v2089
  %v2178 = vpop.f32.mrb[0].mxu0
  %v2179 = vadd.f32 0.0, %v2178
  %v2180 = vpop.f32.mrb[0].mxu0
  %2181 = vmatprep.mubr.f32.mxu0 0.0
  %2182 = vmatmul.mubr.f32.gmra.mrb[0].mxu0 %v2092
  %v2183 = vpop.f32.mrb[0].mxu0
  %v2184 = vadd.f32 0.0, %v2183
  %v2185 = vpop.f32.mrb[0].mxu0
  %2186 = vmatprep.mubr.f32.mxu0 0.0
  %2187 = vmatmul.mubr.f32.gmra.mrb[0].mxu0 %v2095
  %v2188 = vpop.f32.mrb[0].mxu0
  %v2189 = vadd.f32 0.0, %v2188
  %v2190 = vpop.f32.mrb[0].mxu0
  %2191 = vmatprep.mubr.f32.mxu0 0.0
  %2192 = vmatmul.mubr.f32.gmra.mrb[0].mxu0 %v2098
  %v2193 = vpop.f32.mrb[0].mxu0
  %v2194 = vadd.f32 0.0, %v2193
  %v2195 = vpop.f32.mrb[0].mxu0
  %2196 = vmatprep.mubr.f32.mxu0 0.0
  %2197 = vmatmul.mubr.f32.gmra.mrb[0].mxu0 %v2101
  %v2198 = vpop.f32.mrb[0].mxu0
  %v2199 = vadd.f32 0.0, %v2198
  %v2200 = vpop.f32.mrb[0].mxu0
  %2201 = vmatprep.mubr.f32.mxu0 0.0
  %2202 = vmatmul.mubr.f32.gmra.mrb[0].mxu0 %v2104
  %v2203 = vpop.f32.mrb[0].mxu0
  %v2204 = vadd.f32 0.0, %v2203
  %v2205 = vpop.f32.mrb[0].mxu0
  %2206 = vmatprep.mubr.f32.mxu0 0.0
  %2207 = vmatmul.mubr.f32.gmra.mrb[0].mxu0 %v2107
  %v2208 = vpop.f32.mrb[0].mxu0
  %v2209 = vadd.f32 0.0, %v2208
  %v2210 = vpop.f32.mrb[0].mxu0
  %2211 = vmatprep.mubr.f32.mxu0 0.0
  %2212 = vmatmul.mubr.f32.gmra.mrb[0].mxu0 %v2110
  %v2213 = vpop.f32.mrb[0].mxu0
  %v2214 = vadd.f32 0.0, %v2213
  %v2215 = vpop.f32.mrb[0].mxu0
  %2216 = vdwg.mxu0
  %v2217 = vld [vmem:[%s8] sm:$0x1]
  %v2219 = vlaneseq
  %v2220 = vshrl.u32 %v2219, 7
  %v2221 = vsub.s32 0, %v2220
  %v2222 = vrot.slane %v2217, %v2221
  %v2224 = vmul.f32 %v2179, %v2222
  %v2225 = vmul.f32 %v2184, %v2222
  %v2226 = vmul.f32 %v2189, %v2222
  %v2227 = vmul.f32 %v2194, %v2222
  %v2228 = vmul.f32 %v2199, %v2222
  %v2229 = vmul.f32 %v2204, %v2222
  %v2230 = vmul.f32 %v2209, %v2222
  %v2231 = vmul.f32 %v2214, %v2222
  %v2232 = vld [vmem:[%s9] sm:$0x1]
  %v2234 = vlaneseq
  %v2235 = vshrl.u32 %v2234, 7
  %v2236 = vsub.s32 0, %v2235
  %v2237 = vrot.slane %v2232, %v2236
  %v2239 = vadd.f32 %v2224, %v2237
  %v2240 = vadd.f32 %v2225, %v2237
  %v2241 = vadd.f32 %v2226, %v2237
  %v2242 = vadd.f32 %v2227, %v2237
  %v2243 = vadd.f32 %v2228, %v2237
  %v2244 = vadd.f32 %v2229, %v2237
  %v2245 = vadd.f32 %v2230, %v2237
  %v2246 = vadd.f32 %v2231, %v2237
  %v2247 = vld [vmem:[%s10] sm:$0xff]
  %v2248 = vld [vmem:[%s10 + $0x8] sm:$0xff]
  %vm2249 = vcmask 523264
  %v2251 = vsel %vm2249, %v2247, 0
  %v2254 = vsel %vm2249, %v2248, 0
  %2256 = vmatprep.subr.mxu0 0.0
  %2257 = vmatpush1.msra.mxu0 %v2239
  %2258 = vmatprep.subr.mxu0 0.0
  %2259 = vmatpush1.msra.mxu0 %v2240
  %2260 = vmatprep.subr.mxu0 0.0
  %2261 = vmatpush1.msra.mxu0 %v2241
  %2262 = vmatprep.subr.mxu0 0.0
  %2263 = vmatpush1.msra.mxu0 %v2242
  %2264 = vmatprep.subr.mxu0 0.0
  %2265 = vmatpush1.msra.mxu0 %v2243
  %2266 = vmatprep.subr.mxu0 0.0
  %2267 = vmatpush1.msra.mxu0 %v2244
  %2268 = vmatprep.subr.mxu0 0.0
  %2269 = vmatpush1.msra.mxu0 %v2245
  %2270 = vmatprep.subr.mxu0 0.0
  %2271 = vmatpush1.msra.mxu0 %v2246
  %2272 = vmatprep.subr.mxu0 0.0
  %2273 = vmatpush1.msra.mxu0 0.0
  %2274 = vmatprep.subr.mxu0 0.0
  %2275 = vmatpush1.msra.mxu0 0.0
  %2276 = vmatprep.subr.mxu0 0.0
  %2277 = vmatpush1.msra.mxu0 0.0
  %2278 = vmatprep.subr.mxu0 0.0
  %2279 = vmatpush1.msra.mxu0 0.0
  %2280 = vmatprep.subr.mxu0 0.0
  %2281 = vmatpush1.msra.mxu0 0.0
  %2282 = vmatprep.subr.mxu0 0.0
  %2283 = vmatpush1.msra.mxu0 0.0
  %2284 = vmatprep.subr.mxu0 0.0
  %2285 = vmatpush1.msra.mxu0 0.0
  %2286 = vmatprep.subr.mxu0 0.0
  %2287 = vmatpush1.msra.mxu0 0.0
  %2288 = vmatprep.subr.mxu0 0.0
  %2289 = vmatpush1.msra.mxu0 0.0
  %2290 = vmatprep.subr.mxu0 0.0
  %2291 = vmatpush1.msra.mxu0 0.0
  %2292 = vmatprep.subr.mxu0 0.0
  %2293 = vmatpush1.msra.mxu0 0.0
  %2294 = vmatprep.subr.mxu0 0.0
  %2295 = vmatpush1.msra.mxu0 0.0
  %2296 = vmatprep.subr.mxu0 0.0
  %2297 = vmatpush1.msra.mxu0 0.0
  %2298 = vmatprep.subr.mxu0 0.0
  %2299 = vmatpush1.msra.mxu0 0.0
  %2300 = vmatprep.subr.mxu0 0.0
  %2301 = vmatpush1.msra.mxu0 0.0
  %2302 = vmatprep.subr.mxu0 0.0
  %2303 = vmatpush1.msra.mxu0 0.0
  %2304 = vmatprep.subr.mxu0 0.0
  %2305 = vmatpush1.msra.mxu0 0.0
  %2306 = vmatprep.subr.mxu0 0.0
  %2307 = vmatpush1.msra.mxu0 0.0
  %2308 = vmatprep.subr.mxu0 0.0
  %2309 = vmatpush1.msra.mxu0 0.0
  %2310 = vmatprep.subr.mxu0 0.0
  %2311 = vmatpush1.msra.mxu0 0.0
  %2312 = vmatprep.subr.mxu0 0.0
  %2313 = vmatpush1.msra.mxu0 0.0
  %2314 = vmatprep.subr.mxu0 0.0
  %2315 = vmatpush1.msra.mxu0 0.0
  %2316 = vmatprep.subr.mxu0 0.0
  %2317 = vmatpush1.msra.mxu0 0.0
  %2318 = vmatprep.subr.mxu0 0.0
  %2319 = vmatpush1.msra.mxu0 0.0
  %2320 = vmatprep.mubr.f32.mxu0 0.0
  %2321 = vmatmul.mubr.f32.gmra.mrb[0].mxu0 %v2251
  %v2322 = vpop.f32.mrb[0].mxu0
  %v2323 = vadd.f32 0.0, %v2322
  %v2324 = vpop.f32.mrb[0].mxu0
  %2325 = vmatprep.mubr.f32.mxu0 0.0
  %2326 = vmatmul.mubr.f32.gmra.mrb[0].mxu0 %v2254
  %v2327 = vpop.f32.mrb[0].mxu0
  %v2328 = vadd.f32 0.0, %v2327
  %v2329 = vpop.f32.mrb[0].mxu0
  %2330 = vdwg.mxu0
  %v2331 = vld [vmem:[%s11] sm:$0xff]
  %v2332 = vld [vmem:[%s11 + $0x8] sm:$0xff]
  %v2333 = vld [vmem:[%s12] sm:$0x1]
  %v2335 = vlaneseq
  %v2336 = vshrl.u32 %v2335, 7
  %v2337 = vsub.s32 0, %v2336
  %v2338 = vrot.slane %v2333, %v2337
  %v2341 = vsel %vm381, %v2323, 0
  %v2344 = vsel %vm381, %v2328, 0
  %2346 = vmatprep.subr.mxu0 0.0
  %2347 = vmatpush1.msra.mxu0 %v2331
  %2348 = vmatprep.subr.mxu0 0.0
  %2349 = vmatpush1.msra.mxu0 %v2332
  %2350 = vmatprep.subr.mxu0 0.0
  %2351 = vmatpush1.msra.mxu0 0.0
  %2352 = vmatprep.subr.mxu0 0.0
  %2353 = vmatpush1.msra.mxu0 0.0
  %2354 = vmatprep.subr.mxu0 0.0
  %2355 = vmatpush1.msra.mxu0 0.0
  %2356 = vmatprep.subr.mxu0 0.0
  %2357 = vmatpush1.msra.mxu0 0.0
  %2358 = vmatprep.subr.mxu0 0.0
  %2359 = vmatpush1.msra.mxu0 0.0
  %2360 = vmatprep.subr.mxu0 0.0
  %2361 = vmatpush1.msra.mxu0 0.0
  %2362 = vmatprep.subr.mxu0 0.0
  %2363 = vmatpush1.msra.mxu0 0.0
  %2364 = vmatprep.subr.mxu0 0.0
  %2365 = vmatpush1.msra.mxu0 0.0
  %2366 = vmatprep.subr.mxu0 0.0
  %2367 = vmatpush1.msra.mxu0 0.0
  %2368 = vmatprep.subr.mxu0 0.0
  %2369 = vmatpush1.msra.mxu0 0.0
  %2370 = vmatprep.subr.mxu0 0.0
  %2371 = vmatpush1.msra.mxu0 0.0
  %2372 = vmatprep.subr.mxu0 0.0
  %2373 = vmatpush1.msra.mxu0 0.0
  %2374 = vmatprep.subr.mxu0 0.0
  %2375 = vmatpush1.msra.mxu0 0.0
  %2376 = vmatprep.subr.mxu0 0.0
  %2377 = vmatpush1.msra.mxu0 0.0
  %2378 = vmatprep.subr.mxu0 0.0
  %2379 = vmatpush1.msra.mxu0 0.0
  %2380 = vmatprep.subr.mxu0 0.0
  %2381 = vmatpush1.msra.mxu0 0.0
  %2382 = vmatprep.subr.mxu0 0.0
  %2383 = vmatpush1.msra.mxu0 0.0
  %2384 = vmatprep.subr.mxu0 0.0
  %2385 = vmatpush1.msra.mxu0 0.0
  %2386 = vmatprep.subr.mxu0 0.0
  %2387 = vmatpush1.msra.mxu0 0.0
  %2388 = vmatprep.subr.mxu0 0.0
  %2389 = vmatpush1.msra.mxu0 0.0
  %2390 = vmatprep.subr.mxu0 0.0
  %2391 = vmatpush1.msra.mxu0 0.0
  %2392 = vmatprep.subr.mxu0 0.0
  %2393 = vmatpush1.msra.mxu0 0.0
  %2394 = vmatprep.subr.mxu0 0.0
  %2395 = vmatpush1.msra.mxu0 0.0
  %2396 = vmatprep.subr.mxu0 0.0
  %2397 = vmatpush1.msra.mxu0 0.0
  %2398 = vmatprep.subr.mxu0 0.0
  %2399 = vmatpush1.msra.mxu0 0.0
  %2400 = vmatprep.subr.mxu0 0.0
  %2401 = vmatpush1.msra.mxu0 0.0
  %2402 = vmatprep.subr.mxu0 0.0
  %2403 = vmatpush1.msra.mxu0 0.0
  %2404 = vmatprep.subr.mxu0 0.0
  %2405 = vmatpush1.msra.mxu0 0.0
  %2406 = vmatprep.subr.mxu0 0.0
  %2407 = vmatpush1.msra.mxu0 0.0
  %2408 = vmatprep.subr.mxu0 0.0
  %2409 = vmatpush1.msra.mxu0 0.0
  %2410 = vmatprep.mubr.f32.mxu0 0.0
  %2411 = vmatmul.mubr.f32.gmra.mrb[0].mxu0 %v2341
  %v2412 = vpop.f32.mrb[0].mxu0
  %v2413 = vadd.f32 %v2338, %v2412
  %v2414 = vpop.f32.mrb[0].mxu0
  %2415 = vmatprep.mubr.f32.mxu0 0.0
  %2416 = vmatmul.mubr.f32.gmra.mrb[0].mxu0 %v2344
  %v2417 = vpop.f32.mrb[0].mxu0
  %v2418 = vadd.f32 %v2338, %v2417
  %v2419 = vpop.f32.mrb[0].mxu0
  %2420 = vdwg.mxu0
  %vm2421 = vcmp.gt.f32.partialorder %v2413, 20.0
  %vm2422 = vcmp.gt.f32.partialorder %v2418, 20.0
  %v2423 = vmin.f32 %v2413, 20.0
  %v2424 = vmin.f32 %v2418, 20.0
  %v2425 = vmul.f32 %v2423, 1.442695
  %v2426 = vpow.pop %v2425
  %v2427 = vmul.f32 %v2424, 1.442695
  %v2428 = vpow.pop %v2427
  %v2429 = vadd.f32 %v2426, 1.0
  %v2430 = vadd.f32 %v2428, 1.0
  %v2431 = vlog2.pop %v2429
  %v2432 = vmul.f32 %v2431, 0.6931472
  %v2433 = vlog2.pop %v2430
  %v2434 = vmul.f32 %v2433, 0.6931472
  %v2435 = vsel %vm2421, %v2413, %v2432
  %v2436 = vsel %vm2422, %v2418, %v2434
  %vm2437 = vcmask 23552
  %2438 = vst.msk [vmem:[%s13] sm:$0xff] %vm2437, %v2435
  %2439 = vst.msk [vmem:[%s13 + $0x8] sm:$0xff] %vm2437, %v2436
  // Predicated region
  $region54: #{tpu_custom_call.1} parent=0 // pred_check
    _
  $region55: #{tpu_custom_call.1} parent=0 // pred_check_branch
    %2441 = sbr.rel (0) target = $region57
  $region56: #{tpu_custom_call.1} parent=0 // pred_region
    _
  $region57: #{tpu_custom_call.1} parent=0 // pred_fallthru
    _
  // Predicated region
  $region58: #{tpu_custom_call.1} parent=0 // pred_check
    _
  $region59: #{tpu_custom_call.1} parent=0 // pred_check_branch
    %2443 = sbr.rel (0) target = $region61
  $region60: #{tpu_custom_call.1} parent=0 // pred_region
    _
  $region61: #{tpu_custom_call.1} parent=0 // pred_fallthru
    _

</llo_original>
